<compile_context>
chip_gen: v7x
topology: tpu7x:2x2x1
jax: 0.10.0
libtpu: 0.0.40
codegen_flags: <defaults>
</compile_context>

<pallas_src>
import numpy as np
import jax
import jax.numpy as jnp
from jax.experimental import pallas as pl
from jax.experimental.pallas import tpu as pltpu

IMAGENET_STD = (0.229, 0.224, 0.225)
IMAGENET_MEAN = (0.485, 0.456, 0.406)
NUM_SLOTS = 7  # model_apparel, warped, model, warped_model, rand, rand_warped, out_on_rand

# Fold *255 and the round-half-up bias into trace-time Python scalars so the
# kernel body captures no array constants:
#   uint8(x) = trunc(clip(x*(255*std) + (255*mean) + 0.5, 0, 255))
_SCALE = tuple(255.0 * s for s in IMAGENET_STD)
_OFFSET = tuple(255.0 * m + 0.5 for m in IMAGENET_MEAN)


def _denorm_paste_kernel(x0, x1, x2, x3, x4, x5, x6, out_ref):
    """Denormalize seven (C, rows_blk, lane) tiles and write them as uint8
    into the slot-major, channel-planar output tile (NUM_SLOTS, C, rows_blk, lane)."""
    in_refs = (x0, x1, x2, x3, x4, x5, x6)
    C = x0.shape[0]
    for s, ref in enumerate(in_refs):          # static unroll over the 7 slots
        for c in range(C):                     # static unroll, scalar constants only
            y = ref[c].astype(jnp.float32) * _SCALE[c] + _OFFSET[c]
            y = jnp.clip(y, 0.0, 255.0)        # image-safe clip (np.uint8 would wrap)
            # truncating cast (via i32 for robust lowering) performs the rounding
            out_ref[s, c] = y.astype(jnp.int32).astype(jnp.uint8)


def _choose_row_split(rows, max_splits=8):
    """Largest split <= max_splits keeping the row block a multiple of 8
    sublanes (f32-friendly); else any divisor with >= 8 rows per block."""
    best = 1
    for n in range(2, max_splits + 1):
        if rows % n == 0 and (rows // n) % 8 == 0:
            best = n
    if best == 1:
        for n in range(2, max_splits + 1):
            if rows % n == 0 and rows // n >= 8:
                best = n
    return best


def geo_transformation_infer(model_apparel, warped_image, model_image,
                             warped_model_image, random_product_image,
                             random_product_image_warped,
                             output_on_random_product):
    """Returns the channel-planar uint8 sheet tensor of shape
    (B, NUM_SLOTS, C, H, W).  Use `assemble_sheets_host` to get the
    (B, H, NUM_SLOTS*W, C) HWC sheets for image writing."""
    imgs = (model_apparel, warped_image, model_image, warped_model_image,
            random_product_image, random_product_image_warped,
            output_on_random_product)
    B, C, H, W = imgs[0].shape
    assert C == len(IMAGENET_STD), "module assumes RGB (3-channel) images"
    for x in imgs:
        assert x.shape == (B, C, H, W)
    HW = H * W

    # Lane axis = 128 (H*W = 50176 = 392*128 for the real 224x224 images).
    if HW % 128 == 0:
        lane, rows = 128, HW // 128
    else:  # fallback: keep the natural (H, W) spatial layout
        lane, rows = W, H
    nsplit = _choose_row_split(rows)
    rows_blk = rows // nsplit

    # Contiguous reshape (metadata only); original dtype kept (upcast in-kernel).
    # The pre-split (nsplit, rows_blk) row axis means every block's last two
    # dims equal the full array dims -> always a legal, tile-aligned window.
    flats = tuple(x.reshape(B, C, nsplit, rows_blk, lane) for x in imgs)

    in_spec = pl.BlockSpec(
        (pl.Squeezed(), C, pl.Squeezed(), rows_blk, lane),
        lambda b, r: (b, 0, r, 0, 0))
    out_spec = pl.BlockSpec(
        (pl.Squeezed(), NUM_SLOTS, C, pl.Squeezed(), rows_blk, lane),
        lambda b, r: (b, 0, 0, r, 0, 0))

    n_elem = NUM_SLOTS * B * C * HW
    in_itemsize = np.dtype(imgs[0].dtype).itemsize
    cost = pl.CostEstimate(flops=4 * n_elem, transcendentals=0,
                           bytes_accessed=n_elem * (in_itemsize + 1))

    planar = pl.pallas_call(
        _denorm_paste_kernel,
        out_shape=jax.ShapeDtypeStruct(
            (B, NUM_SLOTS, C, nsplit, rows_blk, lane), jnp.uint8),
        grid_spec=pltpu.PrefetchScalarGridSpec(
            num_scalar_prefetch=0,
            grid=(B, nsplit),
            in_specs=[in_spec] * NUM_SLOTS,
            out_specs=out_spec,
        ),
        compiler_params=pltpu.CompilerParams(
            dimension_semantics=("parallel", "parallel")),
        cost_estimate=cost,
    )(*flats)

    return planar.reshape(B, NUM_SLOTS, C, H, W)


def assemble_sheets_host(planar_u8):
    """(B, S, C, H, W) uint8 -> (B, H, S*W, C) uint8 HWC sheets, on the host.

    The channel interleave / horizontal paste of the 7 images is pure layout
    glue done in NumPy right before PIL image construction."""
    p = np.asarray(planar_u8)
    B, S, C, H, W = p.shape
    sheets = np.transpose(p, (0, 3, 1, 4, 2)).reshape(B, H, S * W, C)
    # TODO(synk): Image.fromarray(sheets[i]).save(output_dir/...) is disk I/O
    # with no Pallas equivalent; the sheet tensors are returned instead.
    return sheets


if __name__ == "__main__":
    key = jax.random.PRNGKey(0)
    B, C, H, W = 2, 3, 64, 64      # small stand-in for the real 3x224x224
    keys = jax.random.split(key, NUM_SLOTS)
    # Synthetic "ImageNet-normalized" network outputs.
    inputs = [jax.random.normal(k, (B, C, H, W), dtype=jnp.float32)
              for k in keys]

    infer = jax.jit(geo_transformation_infer)
    planar = infer(*inputs)
    jax.block_until_ready(planar)
    assert planar.shape == (B, NUM_SLOTS, C, H, W)
    assert planar.dtype == jnp.uint8

    sheets = assemble_sheets_host(planar)
    assert sheets.shape == (B, H, NUM_SLOTS * W, C)
    assert sheets.dtype == np.uint8

    # Pure-NumPy reference of the original per-image math (with the clip +
    # round image semantics the kernel implements).
    std = np.asarray(IMAGENET_STD, np.float32)
    mean = np.asarray(IMAGENET_MEAN, np.float32)
    ref_slots = []
    for x in inputs:
        hwc = np.moveaxis(np.asarray(x), 1, 3)            # (B, H, W, C)
        y = (hwc * std + mean) * 255.0
        ref_slots.append(np.clip(np.rint(y), 0.0, 255.0).astype(np.uint8))
    ref_sheet = np.concatenate(ref_slots, axis=2)         # (B, H, 7*W, C)

    diff = np.abs(sheets.astype(np.int32) - ref_sheet.astype(np.int32))
    assert diff.max() <= 1, f"max abs diff {diff.max()}"
    print("KERNEL_OK")
</pallas_src>

<mosaic_0001>
module attributes {stable_mosaic.version = 11 : i64} {
  func.func @_denorm_paste_kernel(%arg0: i32, %arg1: i32, %arg2: memref<1x3x1x8x128xf32, #tpu.memory_space<vmem>>, %arg3: memref<1x3x1x8x128xf32, #tpu.memory_space<vmem>>, %arg4: memref<1x3x1x8x128xf32, #tpu.memory_space<vmem>>, %arg5: memref<1x3x1x8x128xf32, #tpu.memory_space<vmem>>, %arg6: memref<1x3x1x8x128xf32, #tpu.memory_space<vmem>>, %arg7: memref<1x3x1x8x128xf32, #tpu.memory_space<vmem>>, %arg8: memref<1x3x1x8x128xf32, #tpu.memory_space<vmem>>, %arg9: memref<1x7x3x1x8x128xi8, #tpu.memory_space<vmem>>) attributes {dimension_semantics = [#tpu.dimension_semantics<parallel>, #tpu.dimension_semantics<parallel>], iteration_bounds = array<i64: 2, 4>, scalar_prefetch = 0 : i64, scratch_operands = 0 : i64, tpu.core_type = #tpu.core_type<tc>, window_params = [{transform_indices = @transform_0, window_bounds = array<i64: 1, 3, 1, 8, 128>}, {transform_indices = @transform_1, window_bounds = array<i64: 1, 3, 1, 8, 128>}, {transform_indices = @transform_2, window_bounds = array<i64: 1, 3, 1, 8, 128>}, {transform_indices = @transform_3, window_bounds = array<i64: 1, 3, 1, 8, 128>}, {transform_indices = @transform_4, window_bounds = array<i64: 1, 3, 1, 8, 128>}, {transform_indices = @transform_5, window_bounds = array<i64: 1, 3, 1, 8, 128>}, {transform_indices = @transform_6, window_bounds = array<i64: 1, 3, 1, 8, 128>}, {transform_indices = @transform_7, window_bounds = array<i64: 1, 7, 3, 1, 8, 128>}]} {
    %c0 = arith.constant 0 : index
    %c0_0 = arith.constant 0 : index
    %c0_1 = arith.constant 0 : index
    %c0_2 = arith.constant 0 : index
    %c0_3 = arith.constant 0 : index
    %0 = vector.load %arg2[%c0, %c0_0, %c0_1, %c0_2, %c0_3] : memref<1x3x1x8x128xf32, #tpu.memory_space<vmem>>, vector<1x1x1x8x128xf32>
    %1 = vector.shape_cast %0 : vector<1x1x1x8x128xf32> to vector<8x128xf32>
    %cst = arith.constant 5.839500e+01 : f32
    %2 = vector.broadcast %cst : f32 to vector<8x128xf32>
    %3 = arith.mulf %1, %2 : vector<8x128xf32>
    %cst_4 = arith.constant 1.241750e+02 : f32
    %4 = vector.broadcast %cst_4 : f32 to vector<8x128xf32>
    %5 = arith.addf %3, %4 : vector<8x128xf32>
    %cst_5 = arith.constant 0.000000e+00 : f32
    %cst_6 = arith.constant 2.550000e+02 : f32
    %6 = vector.broadcast %cst_5 : f32 to vector<8x128xf32>
    %7 = arith.maximumf %6, %5 : vector<8x128xf32>
    %8 = vector.broadcast %cst_6 : f32 to vector<8x128xf32>
    %9 = arith.minimumf %8, %7 : vector<8x128xf32>
    %10 = arith.fptosi %9 : vector<8x128xf32> to vector<8x128xi32>
    %11 = arith.trunci %10 : vector<8x128xi32> to vector<8x128xi8>
    %c0_7 = arith.constant 0 : index
    %c0_8 = arith.constant 0 : index
    %c0_9 = arith.constant 0 : index
    %c0_10 = arith.constant 0 : index
    %c0_11 = arith.constant 0 : index
    %c0_12 = arith.constant 0 : index
    %12 = vector.load %arg9[%c0_7, %c0_8, %c0_9, %c0_10, %c0_11, %c0_12] : memref<1x7x3x1x8x128xi8, #tpu.memory_space<vmem>>, vector<1x1x1x1x8x128xi8>
    %13 = vector.shape_cast %12 : vector<1x1x1x1x8x128xi8> to vector<8x128xi8>
    %14 = vector.shape_cast %11 : vector<8x128xi8> to vector<1x1x1x1x8x128xi8>
    tpu.vector_store %arg9[%c0_7, %c0_8, %c0_9, %c0_10, %c0_11, %c0_12], %14 {strides = array<i32>} : memref<1x7x3x1x8x128xi8, #tpu.memory_space<vmem>>, vector<1x1x1x1x8x128xi8>,
    %c0_13 = arith.constant 0 : index
    %c1 = arith.constant 1 : index
    %c0_14 = arith.constant 0 : index
    %c0_15 = arith.constant 0 : index
    %c0_16 = arith.constant 0 : index
    %15 = vector.load %arg2[%c0_13, %c1, %c0_14, %c0_15, %c0_16] : memref<1x3x1x8x128xf32, #tpu.memory_space<vmem>>, vector<1x1x1x8x128xf32>
    %16 = vector.shape_cast %15 : vector<1x1x1x8x128xf32> to vector<8x128xf32>
    %cst_17 = arith.constant 5.712000e+01 : f32
    %17 = vector.broadcast %cst_17 : f32 to vector<8x128xf32>
    %18 = arith.mulf %16, %17 : vector<8x128xf32>
    %cst_18 = arith.constant 1.167800e+02 : f32
    %19 = vector.broadcast %cst_18 : f32 to vector<8x128xf32>
    %20 = arith.addf %18, %19 : vector<8x128xf32>
    %cst_19 = arith.constant 0.000000e+00 : f32
    %cst_20 = arith.constant 2.550000e+02 : f32
    %21 = vector.broadcast %cst_19 : f32 to vector<8x128xf32>
    %22 = arith.maximumf %21, %20 : vector<8x128xf32>
    %23 = vector.broadcast %cst_20 : f32 to vector<8x128xf32>
    %24 = arith.minimumf %23, %22 : vector<8x128xf32>
    %25 = arith.fptosi %24 : vector<8x128xf32> to vector<8x128xi32>
    %26 = arith.trunci %25 : vector<8x128xi32> to vector<8x128xi8>
    %c0_21 = arith.constant 0 : index
    %c0_22 = arith.constant 0 : index
    %c1_23 = arith.constant 1 : index
    %c0_24 = arith.constant 0 : index
    %c0_25 = arith.constant 0 : index
    %c0_26 = arith.constant 0 : index
    %27 = vector.load %arg9[%c0_21, %c0_22, %c1_23, %c0_24, %c0_25, %c0_26] : memref<1x7x3x1x8x128xi8, #tpu.memory_space<vmem>>, vector<1x1x1x1x8x128xi8>
    %28 = vector.shape_cast %27 : vector<1x1x1x1x8x128xi8> to vector<8x128xi8>
    %29 = vector.shape_cast %26 : vector<8x128xi8> to vector<1x1x1x1x8x128xi8>
    tpu.vector_store %arg9[%c0_21, %c0_22, %c1_23, %c0_24, %c0_25, %c0_26], %29 {strides = array<i32>} : memref<1x7x3x1x8x128xi8, #tpu.memory_space<vmem>>, vector<1x1x1x1x8x128xi8>,
    %c0_27 = arith.constant 0 : index
    %c2 = arith.constant 2 : index
    %c0_28 = arith.constant 0 : index
    %c0_29 = arith.constant 0 : index
    %c0_30 = arith.constant 0 : index
    %30 = vector.load %arg2[%c0_27, %c2, %c0_28, %c0_29, %c0_30] : memref<1x3x1x8x128xf32, #tpu.memory_space<vmem>>, vector<1x1x1x8x128xf32>
    %31 = vector.shape_cast %30 : vector<1x1x1x8x128xf32> to vector<8x128xf32>
    %cst_31 = arith.constant 5.737500e+01 : f32
    %32 = vector.broadcast %cst_31 : f32 to vector<8x128xf32>
    %33 = arith.mulf %31, %32 : vector<8x128xf32>
    %cst_32 = arith.constant 1.040300e+02 : f32
    %34 = vector.broadcast %cst_32 : f32 to vector<8x128xf32>
    %35 = arith.addf %33, %34 : vector<8x128xf32>
    %cst_33 = arith.constant 0.000000e+00 : f32
    %cst_34 = arith.constant 2.550000e+02 : f32
    %36 = vector.broadcast %cst_33 : f32 to vector<8x128xf32>
    %37 = arith.maximumf %36, %35 : vector<8x128xf32>
    %38 = vector.broadcast %cst_34 : f32 to vector<8x128xf32>
    %39 = arith.minimumf %38, %37 : vector<8x128xf32>
    %40 = arith.fptosi %39 : vector<8x128xf32> to vector<8x128xi32>
    %41 = arith.trunci %40 : vector<8x128xi32> to vector<8x128xi8>
    %c0_35 = arith.constant 0 : index
    %c0_36 = arith.constant 0 : index
    %c2_37 = arith.constant 2 : index
    %c0_38 = arith.constant 0 : index
    %c0_39 = arith.constant 0 : index
    %c0_40 = arith.constant 0 : index
    %42 = vector.load %arg9[%c0_35, %c0_36, %c2_37, %c0_38, %c0_39, %c0_40] : memref<1x7x3x1x8x128xi8, #tpu.memory_space<vmem>>, vector<1x1x1x1x8x128xi8>
    %43 = vector.shape_cast %42 : vector<1x1x1x1x8x128xi8> to vector<8x128xi8>
    %44 = vector.shape_cast %41 : vector<8x128xi8> to vector<1x1x1x1x8x128xi8>
    tpu.vector_store %arg9[%c0_35, %c0_36, %c2_37, %c0_38, %c0_39, %c0_40], %44 {strides = array<i32>} : memref<1x7x3x1x8x128xi8, #tpu.memory_space<vmem>>, vector<1x1x1x1x8x128xi8>,
    %c0_41 = arith.constant 0 : index
    %c0_42 = arith.constant 0 : index
    %c0_43 = arith.constant 0 : index
    %c0_44 = arith.constant 0 : index
    %c0_45 = arith.constant 0 : index
    %45 = vector.load %arg3[%c0_41, %c0_42, %c0_43, %c0_44, %c0_45] : memref<1x3x1x8x128xf32, #tpu.memory_space<vmem>>, vector<1x1x1x8x128xf32>
    %46 = vector.shape_cast %45 : vector<1x1x1x8x128xf32> to vector<8x128xf32>
    %cst_46 = arith.constant 5.839500e+01 : f32
    %47 = vector.broadcast %cst_46 : f32 to vector<8x128xf32>
    %48 = arith.mulf %46, %47 : vector<8x128xf32>
    %cst_47 = arith.constant 1.241750e+02 : f32
    %49 = vector.broadcast %cst_47 : f32 to vector<8x128xf32>
    %50 = arith.addf %48, %49 : vector<8x128xf32>
    %cst_48 = arith.constant 0.000000e+00 : f32
    %cst_49 = arith.constant 2.550000e+02 : f32
    %51 = vector.broadcast %cst_48 : f32 to vector<8x128xf32>
    %52 = arith.maximumf %51, %50 : vector<8x128xf32>
    %53 = vector.broadcast %cst_49 : f32 to vector<8x128xf32>
    %54 = arith.minimumf %53, %52 : vector<8x128xf32>
    %55 = arith.fptosi %54 : vector<8x128xf32> to vector<8x128xi32>
    %56 = arith.trunci %55 : vector<8x128xi32> to vector<8x128xi8>
    %c0_50 = arith.constant 0 : index
    %c1_51 = arith.constant 1 : index
    %c0_52 = arith.constant 0 : index
    %c0_53 = arith.constant 0 : index
    %c0_54 = arith.constant 0 : index
    %c0_55 = arith.constant 0 : index
    %57 = vector.load %arg9[%c0_50, %c1_51, %c0_52, %c0_53, %c0_54, %c0_55] : memref<1x7x3x1x8x128xi8, #tpu.memory_space<vmem>>, vector<1x1x1x1x8x128xi8>
    %58 = vector.shape_cast %57 : vector<1x1x1x1x8x128xi8> to vector<8x128xi8>
    %59 = vector.shape_cast %56 : vector<8x128xi8> to vector<1x1x1x1x8x128xi8>
    tpu.vector_store %arg9[%c0_50, %c1_51, %c0_52, %c0_53, %c0_54, %c0_55], %59 {strides = array<i32>} : memref<1x7x3x1x8x128xi8, #tpu.memory_space<vmem>>, vector<1x1x1x1x8x128xi8>,
    %c0_56 = arith.constant 0 : index
    %c1_57 = arith.constant 1 : index
    %c0_58 = arith.constant 0 : index
    %c0_59 = arith.constant 0 : index
    %c0_60 = arith.constant 0 : index
    %60 = vector.load %arg3[%c0_56, %c1_57, %c0_58, %c0_59, %c0_60] : memref<1x3x1x8x128xf32, #tpu.memory_space<vmem>>, vector<1x1x1x8x128xf32>
    %61 = vector.shape_cast %60 : vector<1x1x1x8x128xf32> to vector<8x128xf32>
    %cst_61 = arith.constant 5.712000e+01 : f32
    %62 = vector.broadcast %cst_61 : f32 to vector<8x128xf32>
    %63 = arith.mulf %61, %62 : vector<8x128xf32>
    %cst_62 = arith.constant 1.167800e+02 : f32
    %64 = vector.broadcast %cst_62 : f32 to vector<8x128xf32>
    %65 = arith.addf %63, %64 : vector<8x128xf32>
    %cst_63 = arith.constant 0.000000e+00 : f32
    %cst_64 = arith.constant 2.550000e+02 : f32
    %66 = vector.broadcast %cst_63 : f32 to vector<8x128xf32>
    %67 = arith.maximumf %66, %65 : vector<8x128xf32>
    %68 = vector.broadcast %cst_64 : f32 to vector<8x128xf32>
    %69 = arith.minimumf %68, %67 : vector<8x128xf32>
    %70 = arith.fptosi %69 : vector<8x128xf32> to vector<8x128xi32>
    %71 = arith.trunci %70 : vector<8x128xi32> to vector<8x128xi8>
    %c0_65 = arith.constant 0 : index
    %c1_66 = arith.constant 1 : index
    %c1_67 = arith.constant 1 : index
    %c0_68 = arith.constant 0 : index
    %c0_69 = arith.constant 0 : index
    %c0_70 = arith.constant 0 : index
    %72 = vector.load %arg9[%c0_65, %c1_66, %c1_67, %c0_68, %c0_69, %c0_70] : memref<1x7x3x1x8x128xi8, #tpu.memory_space<vmem>>, vector<1x1x1x1x8x128xi8>
    %73 = vector.shape_cast %72 : vector<1x1x1x1x8x128xi8> to vector<8x128xi8>
    %74 = vector.shape_cast %71 : vector<8x128xi8> to vector<1x1x1x1x8x128xi8>
    tpu.vector_store %arg9[%c0_65, %c1_66, %c1_67, %c0_68, %c0_69, %c0_70], %74 {strides = array<i32>} : memref<1x7x3x1x8x128xi8, #tpu.memory_space<vmem>>, vector<1x1x1x1x8x128xi8>,
    %c0_71 = arith.constant 0 : index
    %c2_72 = arith.constant 2 : index
    %c0_73 = arith.constant 0 : index
    %c0_74 = arith.constant 0 : index
    %c0_75 = arith.constant 0 : index
    %75 = vector.load %arg3[%c0_71, %c2_72, %c0_73, %c0_74, %c0_75] : memref<1x3x1x8x128xf32, #tpu.memory_space<vmem>>, vector<1x1x1x8x128xf32>
    %76 = vector.shape_cast %75 : vector<1x1x1x8x128xf32> to vector<8x128xf32>
    %cst_76 = arith.constant 5.737500e+01 : f32
    %77 = vector.broadcast %cst_76 : f32 to vector<8x128xf32>
    %78 = arith.mulf %76, %77 : vector<8x128xf32>
    %cst_77 = arith.constant 1.040300e+02 : f32
    %79 = vector.broadcast %cst_77 : f32 to vector<8x128xf32>
    %80 = arith.addf %78, %79 : vector<8x128xf32>
    %cst_78 = arith.constant 0.000000e+00 : f32
    %cst_79 = arith.constant 2.550000e+02 : f32
    %81 = vector.broadcast %cst_78 : f32 to vector<8x128xf32>
    %82 = arith.maximumf %81, %80 : vector<8x128xf32>
    %83 = vector.broadcast %cst_79 : f32 to vector<8x128xf32>
    %84 = arith.minimumf %83, %82 : vector<8x128xf32>
    %85 = arith.fptosi %84 : vector<8x128xf32> to vector<8x128xi32>
    %86 = arith.trunci %85 : vector<8x128xi32> to vector<8x128xi8>
    %c0_80 = arith.constant 0 : index
    %c1_81 = arith.constant 1 : index
    %c2_82 = arith.constant 2 : index
    %c0_83 = arith.constant 0 : index
    %c0_84 = arith.constant 0 : index
    %c0_85 = arith.constant 0 : index
    %87 = vector.load %arg9[%c0_80, %c1_81, %c2_82, %c0_83, %c0_84, %c0_85] : memref<1x7x3x1x8x128xi8, #tpu.memory_space<vmem>>, vector<1x1x1x1x8x128xi8>
    %88 = vector.shape_cast %87 : vector<1x1x1x1x8x128xi8> to vector<8x128xi8>
    %89 = vector.shape_cast %86 : vector<8x128xi8> to vector<1x1x1x1x8x128xi8>
    tpu.vector_store %arg9[%c0_80, %c1_81, %c2_82, %c0_83, %c0_84, %c0_85], %89 {strides = array<i32>} : memref<1x7x3x1x8x128xi8, #tpu.memory_space<vmem>>, vector<1x1x1x1x8x128xi8>,
    %c0_86 = arith.constant 0 : index
    %c0_87 = arith.constant 0 : index
    %c0_88 = arith.constant 0 : index
    %c0_89 = arith.constant 0 : index
    %c0_90 = arith.constant 0 : index
    %90 = vector.load %arg4[%c0_86, %c0_87, %c0_88, %c0_89, %c0_90] : memref<1x3x1x8x128xf32, #tpu.memory_space<vmem>>, vector<1x1x1x8x128xf32>
    %91 = vector.shape_cast %90 : vector<1x1x1x8x128xf32> to vector<8x128xf32>
    %cst_91 = arith.constant 5.839500e+01 : f32
    %92 = vector.broadcast %cst_91 : f32 to vector<8x128xf32>
    %93 = arith.mulf %91, %92 : vector<8x128xf32>
    %cst_92 = arith.constant 1.241750e+02 : f32
    %94 = vector.broadcast %cst_92 : f32 to vector<8x128xf32>
    %95 = arith.addf %93, %94 : vector<8x128xf32>
    %cst_93 = arith.constant 0.000000e+00 : f32
    %cst_94 = arith.constant 2.550000e+02 : f32
    %96 = vector.broadcast %cst_93 : f32 to vector<8x128xf32>
    %97 = arith.maximumf %96, %95 : vector<8x128xf32>
    %98 = vector.broadcast %cst_94 : f32 to vector<8x128xf32>
    %99 = arith.minimumf %98, %97 : vector<8x128xf32>
    %100 = arith.fptosi %99 : vector<8x128xf32> to vector<8x128xi32>
    %101 = arith.trunci %100 : vector<8x128xi32> to vector<8x128xi8>
    %c0_95 = arith.constant 0 : index
    %c2_96 = arith.constant 2 : index
    %c0_97 = arith.constant 0 : index
    %c0_98 = arith.constant 0 : index
    %c0_99 = arith.constant 0 : index
    %c0_100 = arith.constant 0 : index
    %102 = vector.load %arg9[%c0_95, %c2_96, %c0_97, %c0_98, %c0_99, %c0_100] : memref<1x7x3x1x8x128xi8, #tpu.memory_space<vmem>>, vector<1x1x1x1x8x128xi8>
    %103 = vector.shape_cast %102 : vector<1x1x1x1x8x128xi8> to vector<8x128xi8>
    %104 = vector.shape_cast %101 : vector<8x128xi8> to vector<1x1x1x1x8x128xi8>
    tpu.vector_store %arg9[%c0_95, %c2_96, %c0_97, %c0_98, %c0_99, %c0_100], %104 {strides = array<i32>} : memref<1x7x3x1x8x128xi8, #tpu.memory_space<vmem>>, vector<1x1x1x1x8x128xi8>,
    %c0_101 = arith.constant 0 : index
    %c1_102 = arith.constant 1 : index
    %c0_103 = arith.constant 0 : index
    %c0_104 = arith.constant 0 : index
    %c0_105 = arith.constant 0 : index
    %105 = vector.load %arg4[%c0_101, %c1_102, %c0_103, %c0_104, %c0_105] : memref<1x3x1x8x128xf32, #tpu.memory_space<vmem>>, vector<1x1x1x8x128xf32>
    %106 = vector.shape_cast %105 : vector<1x1x1x8x128xf32> to vector<8x128xf32>
    %cst_106 = arith.constant 5.712000e+01 : f32
    %107 = vector.broadcast %cst_106 : f32 to vector<8x128xf32>
    %108 = arith.mulf %106, %107 : vector<8x128xf32>
    %cst_107 = arith.constant 1.167800e+02 : f32
    %109 = vector.broadcast %cst_107 : f32 to vector<8x128xf32>
    %110 = arith.addf %108, %109 : vector<8x128xf32>
    %cst_108 = arith.constant 0.000000e+00 : f32
    %cst_109 = arith.constant 2.550000e+02 : f32
    %111 = vector.broadcast %cst_108 : f32 to vector<8x128xf32>
    %112 = arith.maximumf %111, %110 : vector<8x128xf32>
    %113 = vector.broadcast %cst_109 : f32 to vector<8x128xf32>
    %114 = arith.minimumf %113, %112 : vector<8x128xf32>
    %115 = arith.fptosi %114 : vector<8x128xf32> to vector<8x128xi32>
    %116 = arith.trunci %115 : vector<8x128xi32> to vector<8x128xi8>
    %c0_110 = arith.constant 0 : index
    %c2_111 = arith.constant 2 : index
    %c1_112 = arith.constant 1 : index
    %c0_113 = arith.constant 0 : index
    %c0_114 = arith.constant 0 : index
    %c0_115 = arith.constant 0 : index
    %117 = vector.load %arg9[%c0_110, %c2_111, %c1_112, %c0_113, %c0_114, %c0_115] : memref<1x7x3x1x8x128xi8, #tpu.memory_space<vmem>>, vector<1x1x1x1x8x128xi8>
    %118 = vector.shape_cast %117 : vector<1x1x1x1x8x128xi8> to vector<8x128xi8>
    %119 = vector.shape_cast %116 : vector<8x128xi8> to vector<1x1x1x1x8x128xi8>
    tpu.vector_store %arg9[%c0_110, %c2_111, %c1_112, %c0_113, %c0_114, %c0_115], %119 {strides = array<i32>} : memref<1x7x3x1x8x128xi8, #tpu.memory_space<vmem>>, vector<1x1x1x1x8x128xi8>,
    %c0_116 = arith.constant 0 : index
    %c2_117 = arith.constant 2 : index
    %c0_118 = arith.constant 0 : index
    %c0_119 = arith.constant 0 : index
    %c0_120 = arith.constant 0 : index
    %120 = vector.load %arg4[%c0_116, %c2_117, %c0_118, %c0_119, %c0_120] : memref<1x3x1x8x128xf32, #tpu.memory_space<vmem>>, vector<1x1x1x8x128xf32>
    %121 = vector.shape_cast %120 : vector<1x1x1x8x128xf32> to vector<8x128xf32>
    %cst_121 = arith.constant 5.737500e+01 : f32
    %122 = vector.broadcast %cst_121 : f32 to vector<8x128xf32>
    %123 = arith.mulf %121, %122 : vector<8x128xf32>
    %cst_122 = arith.constant 1.040300e+02 : f32
    %124 = vector.broadcast %cst_122 : f32 to vector<8x128xf32>
    %125 = arith.addf %123, %124 : vector<8x128xf32>
    %cst_123 = arith.constant 0.000000e+00 : f32
    %cst_124 = arith.constant 2.550000e+02 : f32
    %126 = vector.broadcast %cst_123 : f32 to vector<8x128xf32>
    %127 = arith.maximumf %126, %125 : vector<8x128xf32>
    %128 = vector.broadcast %cst_124 : f32 to vector<8x128xf32>
    %129 = arith.minimumf %128, %127 : vector<8x128xf32>
    %130 = arith.fptosi %129 : vector<8x128xf32> to vector<8x128xi32>
    %131 = arith.trunci %130 : vector<8x128xi32> to vector<8x128xi8>
    %c0_125 = arith.constant 0 : index
    %c2_126 = arith.constant 2 : index
    %c2_127 = arith.constant 2 : index
    %c0_128 = arith.constant 0 : index
    %c0_129 = arith.constant 0 : index
    %c0_130 = arith.constant 0 : index
    %132 = vector.load %arg9[%c0_125, %c2_126, %c2_127, %c0_128, %c0_129, %c0_130] : memref<1x7x3x1x8x128xi8, #tpu.memory_space<vmem>>, vector<1x1x1x1x8x128xi8>
    %133 = vector.shape_cast %132 : vector<1x1x1x1x8x128xi8> to vector<8x128xi8>
    %134 = vector.shape_cast %131 : vector<8x128xi8> to vector<1x1x1x1x8x128xi8>
    tpu.vector_store %arg9[%c0_125, %c2_126, %c2_127, %c0_128, %c0_129, %c0_130], %134 {strides = array<i32>} : memref<1x7x3x1x8x128xi8, #tpu.memory_space<vmem>>, vector<1x1x1x1x8x128xi8>,
    %c0_131 = arith.constant 0 : index
    %c0_132 = arith.constant 0 : index
    %c0_133 = arith.constant 0 : index
    %c0_134 = arith.constant 0 : index
    %c0_135 = arith.constant 0 : index
    %135 = vector.load %arg5[%c0_131, %c0_132, %c0_133, %c0_134, %c0_135] : memref<1x3x1x8x128xf32, #tpu.memory_space<vmem>>, vector<1x1x1x8x128xf32>
    %136 = vector.shape_cast %135 : vector<1x1x1x8x128xf32> to vector<8x128xf32>
    %cst_136 = arith.constant 5.839500e+01 : f32
    %137 = vector.broadcast %cst_136 : f32 to vector<8x128xf32>
    %138 = arith.mulf %136, %137 : vector<8x128xf32>
    %cst_137 = arith.constant 1.241750e+02 : f32
    %139 = vector.broadcast %cst_137 : f32 to vector<8x128xf32>
    %140 = arith.addf %138, %139 : vector<8x128xf32>
    %cst_138 = arith.constant 0.000000e+00 : f32
    %cst_139 = arith.constant 2.550000e+02 : f32
    %141 = vector.broadcast %cst_138 : f32 to vector<8x128xf32>
    %142 = arith.maximumf %141, %140 : vector<8x128xf32>
    %143 = vector.broadcast %cst_139 : f32 to vector<8x128xf32>
    %144 = arith.minimumf %143, %142 : vector<8x128xf32>
    %145 = arith.fptosi %144 : vector<8x128xf32> to vector<8x128xi32>
    %146 = arith.trunci %145 : vector<8x128xi32> to vector<8x128xi8>
    %c0_140 = arith.constant 0 : index
    %c3 = arith.constant 3 : index
    %c0_141 = arith.constant 0 : index
    %c0_142 = arith.constant 0 : index
    %c0_143 = arith.constant 0 : index
    %c0_144 = arith.constant 0 : index
    %147 = vector.load %arg9[%c0_140, %c3, %c0_141, %c0_142, %c0_143, %c0_144] : memref<1x7x3x1x8x128xi8, #tpu.memory_space<vmem>>, vector<1x1x1x1x8x128xi8>
    %148 = vector.shape_cast %147 : vector<1x1x1x1x8x128xi8> to vector<8x128xi8>
    %149 = vector.shape_cast %146 : vector<8x128xi8> to vector<1x1x1x1x8x128xi8>
    tpu.vector_store %arg9[%c0_140, %c3, %c0_141, %c0_142, %c0_143, %c0_144], %149 {strides = array<i32>} : memref<1x7x3x1x8x128xi8, #tpu.memory_space<vmem>>, vector<1x1x1x1x8x128xi8>,
    %c0_145 = arith.constant 0 : index
    %c1_146 = arith.constant 1 : index
    %c0_147 = arith.constant 0 : index
    %c0_148 = arith.constant 0 : index
    %c0_149 = arith.constant 0 : index
    %150 = vector.load %arg5[%c0_145, %c1_146, %c0_147, %c0_148, %c0_149] : memref<1x3x1x8x128xf32, #tpu.memory_space<vmem>>, vector<1x1x1x8x128xf32>
    %151 = vector.shape_cast %150 : vector<1x1x1x8x128xf32> to vector<8x128xf32>
    %cst_150 = arith.constant 5.712000e+01 : f32
    %152 = vector.broadcast %cst_150 : f32 to vector<8x128xf32>
    %153 = arith.mulf %151, %152 : vector<8x128xf32>
    %cst_151 = arith.constant 1.167800e+02 : f32
    %154 = vector.broadcast %cst_151 : f32 to vector<8x128xf32>
    %155 = arith.addf %153, %154 : vector<8x128xf32>
    %cst_152 = arith.constant 0.000000e+00 : f32
    %cst_153 = arith.constant 2.550000e+02 : f32
    %156 = vector.broadcast %cst_152 : f32 to vector<8x128xf32>
    %157 = arith.maximumf %156, %155 : vector<8x128xf32>
    %158 = vector.broadcast %cst_153 : f32 to vector<8x128xf32>
    %159 = arith.minimumf %158, %157 : vector<8x128xf32>
    %160 = arith.fptosi %159 : vector<8x128xf32> to vector<8x128xi32>
    %161 = arith.trunci %160 : vector<8x128xi32> to vector<8x128xi8>
    %c0_154 = arith.constant 0 : index
    %c3_155 = arith.constant 3 : index
    %c1_156 = arith.constant 1 : index
    %c0_157 = arith.constant 0 : index
    %c0_158 = arith.constant 0 : index
    %c0_159 = arith.constant 0 : index
    %162 = vector.load %arg9[%c0_154, %c3_155, %c1_156, %c0_157, %c0_158, %c0_159] : memref<1x7x3x1x8x128xi8, #tpu.memory_space<vmem>>, vector<1x1x1x1x8x128xi8>
    %163 = vector.shape_cast %162 : vector<1x1x1x1x8x128xi8> to vector<8x128xi8>
    %164 = vector.shape_cast %161 : vector<8x128xi8> to vector<1x1x1x1x8x128xi8>
    tpu.vector_store %arg9[%c0_154, %c3_155, %c1_156, %c0_157, %c0_158, %c0_159], %164 {strides = array<i32>} : memref<1x7x3x1x8x128xi8, #tpu.memory_space<vmem>>, vector<1x1x1x1x8x128xi8>,
    %c0_160 = arith.constant 0 : index
    %c2_161 = arith.constant 2 : index
    %c0_162 = arith.constant 0 : index
    %c0_163 = arith.constant 0 : index
    %c0_164 = arith.constant 0 : index
    %165 = vector.load %arg5[%c0_160, %c2_161, %c0_162, %c0_163, %c0_164] : memref<1x3x1x8x128xf32, #tpu.memory_space<vmem>>, vector<1x1x1x8x128xf32>
    %166 = vector.shape_cast %165 : vector<1x1x1x8x128xf32> to vector<8x128xf32>
    %cst_165 = arith.constant 5.737500e+01 : f32
    %167 = vector.broadcast %cst_165 : f32 to vector<8x128xf32>
    %168 = arith.mulf %166, %167 : vector<8x128xf32>
    %cst_166 = arith.constant 1.040300e+02 : f32
    %169 = vector.broadcast %cst_166 : f32 to vector<8x128xf32>
    %170 = arith.addf %168, %169 : vector<8x128xf32>
    %cst_167 = arith.constant 0.000000e+00 : f32
    %cst_168 = arith.constant 2.550000e+02 : f32
    %171 = vector.broadcast %cst_167 : f32 to vector<8x128xf32>
    %172 = arith.maximumf %171, %170 : vector<8x128xf32>
    %173 = vector.broadcast %cst_168 : f32 to vector<8x128xf32>
    %174 = arith.minimumf %173, %172 : vector<8x128xf32>
    %175 = arith.fptosi %174 : vector<8x128xf32> to vector<8x128xi32>
    %176 = arith.trunci %175 : vector<8x128xi32> to vector<8x128xi8>
    %c0_169 = arith.constant 0 : index
    %c3_170 = arith.constant 3 : index
    %c2_171 = arith.constant 2 : index
    %c0_172 = arith.constant 0 : index
    %c0_173 = arith.constant 0 : index
    %c0_174 = arith.constant 0 : index
    %177 = vector.load %arg9[%c0_169, %c3_170, %c2_171, %c0_172, %c0_173, %c0_174] : memref<1x7x3x1x8x128xi8, #tpu.memory_space<vmem>>, vector<1x1x1x1x8x128xi8>
    %178 = vector.shape_cast %177 : vector<1x1x1x1x8x128xi8> to vector<8x128xi8>
    %179 = vector.shape_cast %176 : vector<8x128xi8> to vector<1x1x1x1x8x128xi8>
    tpu.vector_store %arg9[%c0_169, %c3_170, %c2_171, %c0_172, %c0_173, %c0_174], %179 {strides = array<i32>} : memref<1x7x3x1x8x128xi8, #tpu.memory_space<vmem>>, vector<1x1x1x1x8x128xi8>,
    %c0_175 = arith.constant 0 : index
    %c0_176 = arith.constant 0 : index
    %c0_177 = arith.constant 0 : index
    %c0_178 = arith.constant 0 : index
    %c0_179 = arith.constant 0 : index
    %180 = vector.load %arg6[%c0_175, %c0_176, %c0_177, %c0_178, %c0_179] : memref<1x3x1x8x128xf32, #tpu.memory_space<vmem>>, vector<1x1x1x8x128xf32>
    %181 = vector.shape_cast %180 : vector<1x1x1x8x128xf32> to vector<8x128xf32>
    %cst_180 = arith.constant 5.839500e+01 : f32
    %182 = vector.broadcast %cst_180 : f32 to vector<8x128xf32>
    %183 = arith.mulf %181, %182 : vector<8x128xf32>
    %cst_181 = arith.constant 1.241750e+02 : f32
    %184 = vector.broadcast %cst_181 : f32 to vector<8x128xf32>
    %185 = arith.addf %183, %184 : vector<8x128xf32>
    %cst_182 = arith.constant 0.000000e+00 : f32
    %cst_183 = arith.constant 2.550000e+02 : f32
    %186 = vector.broadcast %cst_182 : f32 to vector<8x128xf32>
    %187 = arith.maximumf %186, %185 : vector<8x128xf32>
    %188 = vector.broadcast %cst_183 : f32 to vector<8x128xf32>
    %189 = arith.minimumf %188, %187 : vector<8x128xf32>
    %190 = arith.fptosi %189 : vector<8x128xf32> to vector<8x128xi32>
    %191 = arith.trunci %190 : vector<8x128xi32> to vector<8x128xi8>
    %c0_184 = arith.constant 0 : index
    %c4 = arith.constant 4 : index
    %c0_185 = arith.constant 0 : index
    %c0_186 = arith.constant 0 : index
    %c0_187 = arith.constant 0 : index
    %c0_188 = arith.constant 0 : index
    %192 = vector.load %arg9[%c0_184, %c4, %c0_185, %c0_186, %c0_187, %c0_188] : memref<1x7x3x1x8x128xi8, #tpu.memory_space<vmem>>, vector<1x1x1x1x8x128xi8>
    %193 = vector.shape_cast %192 : vector<1x1x1x1x8x128xi8> to vector<8x128xi8>
    %194 = vector.shape_cast %191 : vector<8x128xi8> to vector<1x1x1x1x8x128xi8>
    tpu.vector_store %arg9[%c0_184, %c4, %c0_185, %c0_186, %c0_187, %c0_188], %194 {strides = array<i32>} : memref<1x7x3x1x8x128xi8, #tpu.memory_space<vmem>>, vector<1x1x1x1x8x128xi8>,
    %c0_189 = arith.constant 0 : index
    %c1_190 = arith.constant 1 : index
    %c0_191 = arith.constant 0 : index
    %c0_192 = arith.constant 0 : index
    %c0_193 = arith.constant 0 : index
    %195 = vector.load %arg6[%c0_189, %c1_190, %c0_191, %c0_192, %c0_193] : memref<1x3x1x8x128xf32, #tpu.memory_space<vmem>>, vector<1x1x1x8x128xf32>
    %196 = vector.shape_cast %195 : vector<1x1x1x8x128xf32> to vector<8x128xf32>
    %cst_194 = arith.constant 5.712000e+01 : f32
    %197 = vector.broadcast %cst_194 : f32 to vector<8x128xf32>
    %198 = arith.mulf %196, %197 : vector<8x128xf32>
    %cst_195 = arith.constant 1.167800e+02 : f32
    %199 = vector.broadcast %cst_195 : f32 to vector<8x128xf32>
    %200 = arith.addf %198, %199 : vector<8x128xf32>
    %cst_196 = arith.constant 0.000000e+00 : f32
    %cst_197 = arith.constant 2.550000e+02 : f32
    %201 = vector.broadcast %cst_196 : f32 to vector<8x128xf32>
    %202 = arith.maximumf %201, %200 : vector<8x128xf32>
    %203 = vector.broadcast %cst_197 : f32 to vector<8x128xf32>
    %204 = arith.minimumf %203, %202 : vector<8x128xf32>
    %205 = arith.fptosi %204 : vector<8x128xf32> to vector<8x128xi32>
    %206 = arith.trunci %205 : vector<8x128xi32> to vector<8x128xi8>
    %c0_198 = arith.constant 0 : index
    %c4_199 = arith.constant 4 : index
    %c1_200 = arith.constant 1 : index
    %c0_201 = arith.constant 0 : index
    %c0_202 = arith.constant 0 : index
    %c0_203 = arith.constant 0 : index
    %207 = vector.load %arg9[%c0_198, %c4_199, %c1_200, %c0_201, %c0_202, %c0_203] : memref<1x7x3x1x8x128xi8, #tpu.memory_space<vmem>>, vector<1x1x1x1x8x128xi8>
    %208 = vector.shape_cast %207 : vector<1x1x1x1x8x128xi8> to vector<8x128xi8>
    %209 = vector.shape_cast %206 : vector<8x128xi8> to vector<1x1x1x1x8x128xi8>
    tpu.vector_store %arg9[%c0_198, %c4_199, %c1_200, %c0_201, %c0_202, %c0_203], %209 {strides = array<i32>} : memref<1x7x3x1x8x128xi8, #tpu.memory_space<vmem>>, vector<1x1x1x1x8x128xi8>,
    %c0_204 = arith.constant 0 : index
    %c2_205 = arith.constant 2 : index
    %c0_206 = arith.constant 0 : index
    %c0_207 = arith.constant 0 : index
    %c0_208 = arith.constant 0 : index
    %210 = vector.load %arg6[%c0_204, %c2_205, %c0_206, %c0_207, %c0_208] : memref<1x3x1x8x128xf32, #tpu.memory_space<vmem>>, vector<1x1x1x8x128xf32>
    %211 = vector.shape_cast %210 : vector<1x1x1x8x128xf32> to vector<8x128xf32>
    %cst_209 = arith.constant 5.737500e+01 : f32
    %212 = vector.broadcast %cst_209 : f32 to vector<8x128xf32>
    %213 = arith.mulf %211, %212 : vector<8x128xf32>
    %cst_210 = arith.constant 1.040300e+02 : f32
    %214 = vector.broadcast %cst_210 : f32 to vector<8x128xf32>
    %215 = arith.addf %213, %214 : vector<8x128xf32>
    %cst_211 = arith.constant 0.000000e+00 : f32
    %cst_212 = arith.constant 2.550000e+02 : f32
    %216 = vector.broadcast %cst_211 : f32 to vector<8x128xf32>
    %217 = arith.maximumf %216, %215 : vector<8x128xf32>
    %218 = vector.broadcast %cst_212 : f32 to vector<8x128xf32>
    %219 = arith.minimumf %218, %217 : vector<8x128xf32>
    %220 = arith.fptosi %219 : vector<8x128xf32> to vector<8x128xi32>
    %221 = arith.trunci %220 : vector<8x128xi32> to vector<8x128xi8>
    %c0_213 = arith.constant 0 : index
    %c4_214 = arith.constant 4 : index
    %c2_215 = arith.constant 2 : index
    %c0_216 = arith.constant 0 : index
    %c0_217 = arith.constant 0 : index
    %c0_218 = arith.constant 0 : index
    %222 = vector.load %arg9[%c0_213, %c4_214, %c2_215, %c0_216, %c0_217, %c0_218] : memref<1x7x3x1x8x128xi8, #tpu.memory_space<vmem>>, vector<1x1x1x1x8x128xi8>
    %223 = vector.shape_cast %222 : vector<1x1x1x1x8x128xi8> to vector<8x128xi8>
    %224 = vector.shape_cast %221 : vector<8x128xi8> to vector<1x1x1x1x8x128xi8>
    tpu.vector_store %arg9[%c0_213, %c4_214, %c2_215, %c0_216, %c0_217, %c0_218], %224 {strides = array<i32>} : memref<1x7x3x1x8x128xi8, #tpu.memory_space<vmem>>, vector<1x1x1x1x8x128xi8>,
    %c0_219 = arith.constant 0 : index
    %c0_220 = arith.constant 0 : index
    %c0_221 = arith.constant 0 : index
    %c0_222 = arith.constant 0 : index
    %c0_223 = arith.constant 0 : index
    %225 = vector.load %arg7[%c0_219, %c0_220, %c0_221, %c0_222, %c0_223] : memref<1x3x1x8x128xf32, #tpu.memory_space<vmem>>, vector<1x1x1x8x128xf32>
    %226 = vector.shape_cast %225 : vector<1x1x1x8x128xf32> to vector<8x128xf32>
    %cst_224 = arith.constant 5.839500e+01 : f32
    %227 = vector.broadcast %cst_224 : f32 to vector<8x128xf32>
    %228 = arith.mulf %226, %227 : vector<8x128xf32>
    %cst_225 = arith.constant 1.241750e+02 : f32
    %229 = vector.broadcast %cst_225 : f32 to vector<8x128xf32>
    %230 = arith.addf %228, %229 : vector<8x128xf32>
    %cst_226 = arith.constant 0.000000e+00 : f32
    %cst_227 = arith.constant 2.550000e+02 : f32
    %231 = vector.broadcast %cst_226 : f32 to vector<8x128xf32>
    %232 = arith.maximumf %231, %230 : vector<8x128xf32>
    %233 = vector.broadcast %cst_227 : f32 to vector<8x128xf32>
    %234 = arith.minimumf %233, %232 : vector<8x128xf32>
    %235 = arith.fptosi %234 : vector<8x128xf32> to vector<8x128xi32>
    %236 = arith.trunci %235 : vector<8x128xi32> to vector<8x128xi8>
    %c0_228 = arith.constant 0 : index
    %c5 = arith.constant 5 : index
    %c0_229 = arith.constant 0 : index
    %c0_230 = arith.constant 0 : index
    %c0_231 = arith.constant 0 : index
    %c0_232 = arith.constant 0 : index
    %237 = vector.load %arg9[%c0_228, %c5, %c0_229, %c0_230, %c0_231, %c0_232] : memref<1x7x3x1x8x128xi8, #tpu.memory_space<vmem>>, vector<1x1x1x1x8x128xi8>
    %238 = vector.shape_cast %237 : vector<1x1x1x1x8x128xi8> to vector<8x128xi8>
    %239 = vector.shape_cast %236 : vector<8x128xi8> to vector<1x1x1x1x8x128xi8>
    tpu.vector_store %arg9[%c0_228, %c5, %c0_229, %c0_230, %c0_231, %c0_232], %239 {strides = array<i32>} : memref<1x7x3x1x8x128xi8, #tpu.memory_space<vmem>>, vector<1x1x1x1x8x128xi8>,
    %c0_233 = arith.constant 0 : index
    %c1_234 = arith.constant 1 : index
    %c0_235 = arith.constant 0 : index
    %c0_236 = arith.constant 0 : index
    %c0_237 = arith.constant 0 : index
    %240 = vector.load %arg7[%c0_233, %c1_234, %c0_235, %c0_236, %c0_237] : memref<1x3x1x8x128xf32, #tpu.memory_space<vmem>>, vector<1x1x1x8x128xf32>
    %241 = vector.shape_cast %240 : vector<1x1x1x8x128xf32> to vector<8x128xf32>
    %cst_238 = arith.constant 5.712000e+01 : f32
    %242 = vector.broadcast %cst_238 : f32 to vector<8x128xf32>
    %243 = arith.mulf %241, %242 : vector<8x128xf32>
    %cst_239 = arith.constant 1.167800e+02 : f32
    %244 = vector.broadcast %cst_239 : f32 to vector<8x128xf32>
    %245 = arith.addf %243, %244 : vector<8x128xf32>
    %cst_240 = arith.constant 0.000000e+00 : f32
    %cst_241 = arith.constant 2.550000e+02 : f32
    %246 = vector.broadcast %cst_240 : f32 to vector<8x128xf32>
    %247 = arith.maximumf %246, %245 : vector<8x128xf32>
    %248 = vector.broadcast %cst_241 : f32 to vector<8x128xf32>
    %249 = arith.minimumf %248, %247 : vector<8x128xf32>
    %250 = arith.fptosi %249 : vector<8x128xf32> to vector<8x128xi32>
    %251 = arith.trunci %250 : vector<8x128xi32> to vector<8x128xi8>
    %c0_242 = arith.constant 0 : index
    %c5_243 = arith.constant 5 : index
    %c1_244 = arith.constant 1 : index
    %c0_245 = arith.constant 0 : index
    %c0_246 = arith.constant 0 : index
    %c0_247 = arith.constant 0 : index
    %252 = vector.load %arg9[%c0_242, %c5_243, %c1_244, %c0_245, %c0_246, %c0_247] : memref<1x7x3x1x8x128xi8, #tpu.memory_space<vmem>>, vector<1x1x1x1x8x128xi8>
    %253 = vector.shape_cast %252 : vector<1x1x1x1x8x128xi8> to vector<8x128xi8>
    %254 = vector.shape_cast %251 : vector<8x128xi8> to vector<1x1x1x1x8x128xi8>
    tpu.vector_store %arg9[%c0_242, %c5_243, %c1_244, %c0_245, %c0_246, %c0_247], %254 {strides = array<i32>} : memref<1x7x3x1x8x128xi8, #tpu.memory_space<vmem>>, vector<1x1x1x1x8x128xi8>,
    %c0_248 = arith.constant 0 : index
    %c2_249 = arith.constant 2 : index
    %c0_250 = arith.constant 0 : index
    %c0_251 = arith.constant 0 : index
    %c0_252 = arith.constant 0 : index
    %255 = vector.load %arg7[%c0_248, %c2_249, %c0_250, %c0_251, %c0_252] : memref<1x3x1x8x128xf32, #tpu.memory_space<vmem>>, vector<1x1x1x8x128xf32>
    %256 = vector.shape_cast %255 : vector<1x1x1x8x128xf32> to vector<8x128xf32>
    %cst_253 = arith.constant 5.737500e+01 : f32
    %257 = vector.broadcast %cst_253 : f32 to vector<8x128xf32>
    %258 = arith.mulf %256, %257 : vector<8x128xf32>
    %cst_254 = arith.constant 1.040300e+02 : f32
    %259 = vector.broadcast %cst_254 : f32 to vector<8x128xf32>
    %260 = arith.addf %258, %259 : vector<8x128xf32>
    %cst_255 = arith.constant 0.000000e+00 : f32
    %cst_256 = arith.constant 2.550000e+02 : f32
    %261 = vector.broadcast %cst_255 : f32 to vector<8x128xf32>
    %262 = arith.maximumf %261, %260 : vector<8x128xf32>
    %263 = vector.broadcast %cst_256 : f32 to vector<8x128xf32>
    %264 = arith.minimumf %263, %262 : vector<8x128xf32>
    %265 = arith.fptosi %264 : vector<8x128xf32> to vector<8x128xi32>
    %266 = arith.trunci %265 : vector<8x128xi32> to vector<8x128xi8>
    %c0_257 = arith.constant 0 : index
    %c5_258 = arith.constant 5 : index
    %c2_259 = arith.constant 2 : index
    %c0_260 = arith.constant 0 : index
    %c0_261 = arith.constant 0 : index
    %c0_262 = arith.constant 0 : index
    %267 = vector.load %arg9[%c0_257, %c5_258, %c2_259, %c0_260, %c0_261, %c0_262] : memref<1x7x3x1x8x128xi8, #tpu.memory_space<vmem>>, vector<1x1x1x1x8x128xi8>
    %268 = vector.shape_cast %267 : vector<1x1x1x1x8x128xi8> to vector<8x128xi8>
    %269 = vector.shape_cast %266 : vector<8x128xi8> to vector<1x1x1x1x8x128xi8>
    tpu.vector_store %arg9[%c0_257, %c5_258, %c2_259, %c0_260, %c0_261, %c0_262], %269 {strides = array<i32>} : memref<1x7x3x1x8x128xi8, #tpu.memory_space<vmem>>, vector<1x1x1x1x8x128xi8>,
    %c0_263 = arith.constant 0 : index
    %c0_264 = arith.constant 0 : index
    %c0_265 = arith.constant 0 : index
    %c0_266 = arith.constant 0 : index
    %c0_267 = arith.constant 0 : index
    %270 = vector.load %arg8[%c0_263, %c0_264, %c0_265, %c0_266, %c0_267] : memref<1x3x1x8x128xf32, #tpu.memory_space<vmem>>, vector<1x1x1x8x128xf32>
    %271 = vector.shape_cast %270 : vector<1x1x1x8x128xf32> to vector<8x128xf32>
    %cst_268 = arith.constant 5.839500e+01 : f32
    %272 = vector.broadcast %cst_268 : f32 to vector<8x128xf32>
    %273 = arith.mulf %271, %272 : vector<8x128xf32>
    %cst_269 = arith.constant 1.241750e+02 : f32
    %274 = vector.broadcast %cst_269 : f32 to vector<8x128xf32>
    %275 = arith.addf %273, %274 : vector<8x128xf32>
    %cst_270 = arith.constant 0.000000e+00 : f32
    %cst_271 = arith.constant 2.550000e+02 : f32
    %276 = vector.broadcast %cst_270 : f32 to vector<8x128xf32>
    %277 = arith.maximumf %276, %275 : vector<8x128xf32>
    %278 = vector.broadcast %cst_271 : f32 to vector<8x128xf32>
    %279 = arith.minimumf %278, %277 : vector<8x128xf32>
    %280 = arith.fptosi %279 : vector<8x128xf32> to vector<8x128xi32>
    %281 = arith.trunci %280 : vector<8x128xi32> to vector<8x128xi8>
    %c0_272 = arith.constant 0 : index
    %c6 = arith.constant 6 : index
    %c0_273 = arith.constant 0 : index
    %c0_274 = arith.constant 0 : index
    %c0_275 = arith.constant 0 : index
    %c0_276 = arith.constant 0 : index
    %282 = vector.load %arg9[%c0_272, %c6, %c0_273, %c0_274, %c0_275, %c0_276] : memref<1x7x3x1x8x128xi8, #tpu.memory_space<vmem>>, vector<1x1x1x1x8x128xi8>
    %283 = vector.shape_cast %282 : vector<1x1x1x1x8x128xi8> to vector<8x128xi8>
    %284 = vector.shape_cast %281 : vector<8x128xi8> to vector<1x1x1x1x8x128xi8>
    tpu.vector_store %arg9[%c0_272, %c6, %c0_273, %c0_274, %c0_275, %c0_276], %284 {strides = array<i32>} : memref<1x7x3x1x8x128xi8, #tpu.memory_space<vmem>>, vector<1x1x1x1x8x128xi8>,
    %c0_277 = arith.constant 0 : index
    %c1_278 = arith.constant 1 : index
    %c0_279 = arith.constant 0 : index
    %c0_280 = arith.constant 0 : index
    %c0_281 = arith.constant 0 : index
    %285 = vector.load %arg8[%c0_277, %c1_278, %c0_279, %c0_280, %c0_281] : memref<1x3x1x8x128xf32, #tpu.memory_space<vmem>>, vector<1x1x1x8x128xf32>
    %286 = vector.shape_cast %285 : vector<1x1x1x8x128xf32> to vector<8x128xf32>
    %cst_282 = arith.constant 5.712000e+01 : f32
    %287 = vector.broadcast %cst_282 : f32 to vector<8x128xf32>
    %288 = arith.mulf %286, %287 : vector<8x128xf32>
    %cst_283 = arith.constant 1.167800e+02 : f32
    %289 = vector.broadcast %cst_283 : f32 to vector<8x128xf32>
    %290 = arith.addf %288, %289 : vector<8x128xf32>
    %cst_284 = arith.constant 0.000000e+00 : f32
    %cst_285 = arith.constant 2.550000e+02 : f32
    %291 = vector.broadcast %cst_284 : f32 to vector<8x128xf32>
    %292 = arith.maximumf %291, %290 : vector<8x128xf32>
    %293 = vector.broadcast %cst_285 : f32 to vector<8x128xf32>
    %294 = arith.minimumf %293, %292 : vector<8x128xf32>
    %295 = arith.fptosi %294 : vector<8x128xf32> to vector<8x128xi32>
    %296 = arith.trunci %295 : vector<8x128xi32> to vector<8x128xi8>
    %c0_286 = arith.constant 0 : index
    %c6_287 = arith.constant 6 : index
    %c1_288 = arith.constant 1 : index
    %c0_289 = arith.constant 0 : index
    %c0_290 = arith.constant 0 : index
    %c0_291 = arith.constant 0 : index
    %297 = vector.load %arg9[%c0_286, %c6_287, %c1_288, %c0_289, %c0_290, %c0_291] : memref<1x7x3x1x8x128xi8, #tpu.memory_space<vmem>>, vector<1x1x1x1x8x128xi8>
    %298 = vector.shape_cast %297 : vector<1x1x1x1x8x128xi8> to vector<8x128xi8>
    %299 = vector.shape_cast %296 : vector<8x128xi8> to vector<1x1x1x1x8x128xi8>
    tpu.vector_store %arg9[%c0_286, %c6_287, %c1_288, %c0_289, %c0_290, %c0_291], %299 {strides = array<i32>} : memref<1x7x3x1x8x128xi8, #tpu.memory_space<vmem>>, vector<1x1x1x1x8x128xi8>,
    %c0_292 = arith.constant 0 : index
    %c2_293 = arith.constant 2 : index
    %c0_294 = arith.constant 0 : index
    %c0_295 = arith.constant 0 : index
    %c0_296 = arith.constant 0 : index
    %300 = vector.load %arg8[%c0_292, %c2_293, %c0_294, %c0_295, %c0_296] : memref<1x3x1x8x128xf32, #tpu.memory_space<vmem>>, vector<1x1x1x8x128xf32>
    %301 = vector.shape_cast %300 : vector<1x1x1x8x128xf32> to vector<8x128xf32>
    %cst_297 = arith.constant 5.737500e+01 : f32
    %302 = vector.broadcast %cst_297 : f32 to vector<8x128xf32>
    %303 = arith.mulf %301, %302 : vector<8x128xf32>
    %cst_298 = arith.constant 1.040300e+02 : f32
    %304 = vector.broadcast %cst_298 : f32 to vector<8x128xf32>
    %305 = arith.addf %303, %304 : vector<8x128xf32>
    %cst_299 = arith.constant 0.000000e+00 : f32
    %cst_300 = arith.constant 2.550000e+02 : f32
    %306 = vector.broadcast %cst_299 : f32 to vector<8x128xf32>
    %307 = arith.maximumf %306, %305 : vector<8x128xf32>
    %308 = vector.broadcast %cst_300 : f32 to vector<8x128xf32>
    %309 = arith.minimumf %308, %307 : vector<8x128xf32>
    %310 = arith.fptosi %309 : vector<8x128xf32> to vector<8x128xi32>
    %311 = arith.trunci %310 : vector<8x128xi32> to vector<8x128xi8>
    %c0_301 = arith.constant 0 : index
    %c6_302 = arith.constant 6 : index
    %c2_303 = arith.constant 2 : index
    %c0_304 = arith.constant 0 : index
    %c0_305 = arith.constant 0 : index
    %c0_306 = arith.constant 0 : index
    %312 = vector.load %arg9[%c0_301, %c6_302, %c2_303, %c0_304, %c0_305, %c0_306] : memref<1x7x3x1x8x128xi8, #tpu.memory_space<vmem>>, vector<1x1x1x1x8x128xi8>
    %313 = vector.shape_cast %312 : vector<1x1x1x1x8x128xi8> to vector<8x128xi8>
    %314 = vector.shape_cast %311 : vector<8x128xi8> to vector<1x1x1x1x8x128xi8>
    tpu.vector_store %arg9[%c0_301, %c6_302, %c2_303, %c0_304, %c0_305, %c0_306], %314 {strides = array<i32>} : memref<1x7x3x1x8x128xi8, #tpu.memory_space<vmem>>, vector<1x1x1x1x8x128xi8>,
    return
  }
  func.func @transform_0(%arg0: i32, %arg1: i32) -> (i32, i32, i32, i32, i32) {
    %c0_i32 = arith.constant 0 : i32
    %c0_i32_0 = arith.constant 0 : i32
    %c0_i32_1 = arith.constant 0 : i32
    %c0_i32_2 = arith.constant 0 : i32
    return %arg0, %c0_i32, %arg1, %c0_i32_0, %c0_i32_1 : i32, i32, i32, i32, i32
  }
  func.func @transform_1(%arg0: i32, %arg1: i32) -> (i32, i32, i32, i32, i32) {
    %c0_i32 = arith.constant 0 : i32
    %c0_i32_0 = arith.constant 0 : i32
    %c0_i32_1 = arith.constant 0 : i32
    %c0_i32_2 = arith.constant 0 : i32
    return %arg0, %c0_i32, %arg1, %c0_i32_0, %c0_i32_1 : i32, i32, i32, i32, i32
  }
  func.func @transform_2(%arg0: i32, %arg1: i32) -> (i32, i32, i32, i32, i32) {
    %c0_i32 = arith.constant 0 : i32
    %c0_i32_0 = arith.constant 0 : i32
    %c0_i32_1 = arith.constant 0 : i32
    %c0_i32_2 = arith.constant 0 : i32
    return %arg0, %c0_i32, %arg1, %c0_i32_0, %c0_i32_1 : i32, i32, i32, i32, i32
  }
  func.func @transform_3(%arg0: i32, %arg1: i32) -> (i32, i32, i32, i32, i32) {
    %c0_i32 = arith.constant 0 : i32
    %c0_i32_0 = arith.constant 0 : i32
    %c0_i32_1 = arith.constant 0 : i32
    %c0_i32_2 = arith.constant 0 : i32
    return %arg0, %c0_i32, %arg1, %c0_i32_0, %c0_i32_1 : i32, i32, i32, i32, i32
  }
  func.func @transform_4(%arg0: i32, %arg1: i32) -> (i32, i32, i32, i32, i32) {
    %c0_i32 = arith.constant 0 : i32
    %c0_i32_0 = arith.constant 0 : i32
    %c0_i32_1 = arith.constant 0 : i32
    %c0_i32_2 = arith.constant 0 : i32
    return %arg0, %c0_i32, %arg1, %c0_i32_0, %c0_i32_1 : i32, i32, i32, i32, i32
  }
  func.func @transform_5(%arg0: i32, %arg1: i32) -> (i32, i32, i32, i32, i32) {
    %c0_i32 = arith.constant 0 : i32
    %c0_i32_0 = arith.constant 0 : i32
    %c0_i32_1 = arith.constant 0 : i32
    %c0_i32_2 = arith.constant 0 : i32
    return %arg0, %c0_i32, %arg1, %c0_i32_0, %c0_i32_1 : i32, i32, i32, i32, i32
  }
  func.func @transform_6(%arg0: i32, %arg1: i32) -> (i32, i32, i32, i32, i32) {
    %c0_i32 = arith.constant 0 : i32
    %c0_i32_0 = arith.constant 0 : i32
    %c0_i32_1 = arith.constant 0 : i32
    %c0_i32_2 = arith.constant 0 : i32
    return %arg0, %c0_i32, %arg1, %c0_i32_0, %c0_i32_1 : i32, i32, i32, i32, i32
  }
  func.func @transform_7(%arg0: i32, %arg1: i32) -> (i32, i32, i32, i32, i32, i32) {
    %c0_i32 = arith.constant 0 : i32
    %c0_i32_0 = arith.constant 0 : i32
    %c0_i32_1 = arith.constant 0 : i32
    %c0_i32_2 = arith.constant 0 : i32
    %c0_i32_3 = arith.constant 0 : i32
    return %arg0, %c0_i32, %c0_i32_0, %arg1, %c0_i32_1, %c0_i32_2 : i32, i32, i32, i32, i32, i32
  }
}

</mosaic_0001>

<llo_original>
// kernel: geo_transformation_infer.1
$region0: #{geo_transformation_infer.1}
  #allocation0 [shape = 'u32[]', space=smem, size = 0x4, offset = 0x4, fixed_abs, tag = 'smem constant byte address 0x4 - core index']
  #allocation1 [shape = 'u32[144,128]{1,0:T(1,128)}', space=vmem, size = 0x12000, scoped, tag = 'internal scratch']
  %s0 = inlined_call_operand.vmem [shape: f32[2,3,4,8,128], index: 0, kind: input, shape index: {}]
  %s1 = inlined_call_operand.vmem [shape: f32[2,3,4,8,128], index: 1, kind: input, shape index: {}]
  %s2 = inlined_call_operand.vmem [shape: f32[2,3,4,8,128], index: 2, kind: input, shape index: {}]
  %s3 = inlined_call_operand.vmem [shape: f32[2,3,4,8,128], index: 3, kind: input, shape index: {}]
  %s4 = inlined_call_operand.vmem [shape: f32[2,3,4,8,128], index: 4, kind: input, shape index: {}]
  %s5 = inlined_call_operand.vmem [shape: f32[2,3,4,8,128], index: 5, kind: input, shape index: {}]
  %s6 = inlined_call_operand.vmem [shape: f32[2,3,4,8,128], index: 6, kind: input, shape index: {}]
  %s7 = inlined_call_operand.vmem [shape: u8[2,7,3,4,8,128], index: 7, kind: output, shape index: {}]
  %s8 = sld [smem:[#allocation0]]
  $region364: #{geo_transformation_infer.1} parent=0
    _
  %s10 = ssub.s32 1, %s8
  %s11 = scalar_select 0, %s10, %s8
  $region1: #{geo_transformation_infer.1} parent=0
    #allocation2 [shape = 'u8[24576]{0}', space=vmem, size = 0x6000, scoped, tag = 'input window, operand 0']
    #allocation3 [shape = 'u8[24576]{0}', space=vmem, size = 0x6000, scoped, tag = 'input window, operand 1']
    #allocation4 [shape = 'u8[24576]{0}', space=vmem, size = 0x6000, scoped, tag = 'input window, operand 2']
    #allocation5 [shape = 'u8[24576]{0}', space=vmem, size = 0x6000, scoped, tag = 'input window, operand 3']
    #allocation6 [shape = 'u8[24576]{0}', space=vmem, size = 0x6000, scoped, tag = 'input window, operand 4']
    #allocation7 [shape = 'u8[24576]{0}', space=vmem, size = 0x6000, scoped, tag = 'input window, operand 5']
    #allocation8 [shape = 'u8[24576]{0}', space=vmem, size = 0x6000, scoped, tag = 'input window, operand 6']
    #allocation9 [shape = 'u8[43008]{0}', space=vmem, size = 0xa800, scoped, tag = 'output window, operand 0']
    loop: start=0, step=1, limit=10
    $region2: #{geo_transformation_infer.1} parent=1 // loop_pre_header
      _
    $region3: #{geo_transformation_infer.1} parent=1 // loop_header
      %s13 = sphi 0, %s17
      %p14 = scmp.ge.s32.totalorder %s13, 10
      %s20 = sphi 0, %s32
      %s21 = sphi 0, %s28
      %s22 = sphi 0, %s20
      %s23 = sphi 0, %s21
      %s24 = sphi 0, %s22
      %s25 = sphi 0, %s23
      %s37 = sphi 0, %s39
      %s40 = sphi 0, %s37
      %s41 = sphi 0, %s40
      %s57 = sphi 0, %s41
      %s65 = sphi 0, %s67
      %s68 = sphi 0, %s65
      %s69 = sphi 0, %s68
      %s85 = sphi 0, %s69
      %s93 = sphi 0, %s95
      %s96 = sphi 0, %s93
      %s97 = sphi 0, %s96
      %s113 = sphi 0, %s97
      %s121 = sphi 0, %s123
      %s124 = sphi 0, %s121
      %s125 = sphi 0, %s124
      %s141 = sphi 0, %s125
      %s149 = sphi 0, %s151
      %s152 = sphi 0, %s149
      %s153 = sphi 0, %s152
      %s169 = sphi 0, %s153
      %s177 = sphi 0, %s179
      %s180 = sphi 0, %s177
      %s181 = sphi 0, %s180
      %s197 = sphi 0, %s181
      %s205 = sphi 0, %s207
      %s208 = sphi 0, %s205
      %s209 = sphi 0, %s208
      %s225 = sphi 0, %s209
      %s233 = sphi 0, %s235
      %s236 = sphi 0, %s233
      %s237 = sphi 0, %s236
      %s253 = sphi 0, %s237
    $region4: #{geo_transformation_infer.1} parent=1 // loop_header_branch
      %16 = sbr.rel (%p14) target = $region8
    $region5: #{geo_transformation_infer.1} parent=1 // loop_body
      %s18 = ssub.s32 %s13, 1
      %s19 = ssub.s32 %s13, 2
      %s26 = sadd.s32 1, %s21
      %p27 = scmp.ge.s32.totalorder %s26, 4
      %s28 = scalar_select %p27, 0, %s26
      %s29 = sadd.s32 1, %s20
      %s30 = scalar_select %p27, %s29, %s20
      %p31 = scmp.ge.s32.totalorder %s30, 2
      %s32 = scalar_select %p31, 0, %s30
      %s33 = ssub.s32 %s20, %s32
      %s34 = ssub.s32 %s21, %s28
      %s35 = sor.u32 %s33, %s34
      %p36 = scmp.eq.s32.totalorder %s35, 0
      %s38 = sadd.s32 %s37, 1
      %s39 = scalar_select %p36, %s37, %s38
      %p42 = pneg %p36
      %p43 = scmp.eq.s32.totalorder %s13, 7
      %p44 = por %p42, %p43
      %p45 = scmp.ne.s32.totalorder %s37, %s40
      %p46 = scmp.eq.s32.totalorder %s13, 0
      %p47 = por %p45, %p46
      %p48 = scmp.ne.s32.totalorder %s37, %s40
      %p49 = scmp.eq.s32.totalorder %s18, 7
      %p50 = por %p48, %p49
      %p51 = scmp.ne.s32.totalorder %s40, %s41
      %p52 = scmp.eq.s32.totalorder %s18, 0
      %p53 = por %p51, %p52
      %p54 = scmp.ne.s32.totalorder %s40, %s41
      %p55 = scmp.eq.s32.totalorder %s19, 7
      %p56 = por %p54, %p55
      %p58 = scmp.ne.s32.totalorder %s41, %s57
      %p59 = scmp.eq.s32.totalorder %s19, 0
      %p60 = por %p58, %p59
      %s61 = ssub.s32 %s20, %s32
      %s62 = ssub.s32 %s21, %s28
      %s63 = sor.u32 %s61, %s62
      %p64 = scmp.eq.s32.totalorder %s63, 0
      %s66 = sadd.s32 %s65, 1
      %s67 = scalar_select %p64, %s65, %s66
      %p70 = pneg %p64
      %p71 = scmp.eq.s32.totalorder %s13, 7
      %p72 = por %p70, %p71
      %p73 = scmp.ne.s32.totalorder %s65, %s68
      %p74 = scmp.eq.s32.totalorder %s13, 0
      %p75 = por %p73, %p74
      %p76 = scmp.ne.s32.totalorder %s65, %s68
      %p77 = scmp.eq.s32.totalorder %s18, 7
      %p78 = por %p76, %p77
      %p79 = scmp.ne.s32.totalorder %s68, %s69
      %p80 = scmp.eq.s32.totalorder %s18, 0
      %p81 = por %p79, %p80
      %p82 = scmp.ne.s32.totalorder %s68, %s69
      %p83 = scmp.eq.s32.totalorder %s19, 7
      %p84 = por %p82, %p83
      %p86 = scmp.ne.s32.totalorder %s69, %s85
      %p87 = scmp.eq.s32.totalorder %s19, 0
      %p88 = por %p86, %p87
      %s89 = ssub.s32 %s20, %s32
      %s90 = ssub.s32 %s21, %s28
      %s91 = sor.u32 %s89, %s90
      %p92 = scmp.eq.s32.totalorder %s91, 0
      %s94 = sadd.s32 %s93, 1
      %s95 = scalar_select %p92, %s93, %s94
      %p98 = pneg %p92
      %p99 = scmp.eq.s32.totalorder %s13, 7
      %p100 = por %p98, %p99
      %p101 = scmp.ne.s32.totalorder %s93, %s96
      %p102 = scmp.eq.s32.totalorder %s13, 0
      %p103 = por %p101, %p102
      %p104 = scmp.ne.s32.totalorder %s93, %s96
      %p105 = scmp.eq.s32.totalorder %s18, 7
      %p106 = por %p104, %p105
      %p107 = scmp.ne.s32.totalorder %s96, %s97
      %p108 = scmp.eq.s32.totalorder %s18, 0
      %p109 = por %p107, %p108
      %p110 = scmp.ne.s32.totalorder %s96, %s97
      %p111 = scmp.eq.s32.totalorder %s19, 7
      %p112 = por %p110, %p111
      %p114 = scmp.ne.s32.totalorder %s97, %s113
      %p115 = scmp.eq.s32.totalorder %s19, 0
      %p116 = por %p114, %p115
      %s117 = ssub.s32 %s20, %s32
      %s118 = ssub.s32 %s21, %s28
      %s119 = sor.u32 %s117, %s118
      %p120 = scmp.eq.s32.totalorder %s119, 0
      %s122 = sadd.s32 %s121, 1
      %s123 = scalar_select %p120, %s121, %s122
      %p126 = pneg %p120
      %p127 = scmp.eq.s32.totalorder %s13, 7
      %p128 = por %p126, %p127
      %p129 = scmp.ne.s32.totalorder %s121, %s124
      %p130 = scmp.eq.s32.totalorder %s13, 0
      %p131 = por %p129, %p130
      %p132 = scmp.ne.s32.totalorder %s121, %s124
      %p133 = scmp.eq.s32.totalorder %s18, 7
      %p134 = por %p132, %p133
      %p135 = scmp.ne.s32.totalorder %s124, %s125
      %p136 = scmp.eq.s32.totalorder %s18, 0
      %p137 = por %p135, %p136
      %p138 = scmp.ne.s32.totalorder %s124, %s125
      %p139 = scmp.eq.s32.totalorder %s19, 7
      %p140 = por %p138, %p139
      %p142 = scmp.ne.s32.totalorder %s125, %s141
      %p143 = scmp.eq.s32.totalorder %s19, 0
      %p144 = por %p142, %p143
      %s145 = ssub.s32 %s20, %s32
      %s146 = ssub.s32 %s21, %s28
      %s147 = sor.u32 %s145, %s146
      %p148 = scmp.eq.s32.totalorder %s147, 0
      %s150 = sadd.s32 %s149, 1
      %s151 = scalar_select %p148, %s149, %s150
      %p154 = pneg %p148
      %p155 = scmp.eq.s32.totalorder %s13, 7
      %p156 = por %p154, %p155
      %p157 = scmp.ne.s32.totalorder %s149, %s152
      %p158 = scmp.eq.s32.totalorder %s13, 0
      %p159 = por %p157, %p158
      %p160 = scmp.ne.s32.totalorder %s149, %s152
      %p161 = scmp.eq.s32.totalorder %s18, 7
      %p162 = por %p160, %p161
      %p163 = scmp.ne.s32.totalorder %s152, %s153
      %p164 = scmp.eq.s32.totalorder %s18, 0
      %p165 = por %p163, %p164
      %p166 = scmp.ne.s32.totalorder %s152, %s153
      %p167 = scmp.eq.s32.totalorder %s19, 7
      %p168 = por %p166, %p167
      %p170 = scmp.ne.s32.totalorder %s153, %s169
      %p171 = scmp.eq.s32.totalorder %s19, 0
      %p172 = por %p170, %p171
      %s173 = ssub.s32 %s20, %s32
      %s174 = ssub.s32 %s21, %s28
      %s175 = sor.u32 %s173, %s174
      %p176 = scmp.eq.s32.totalorder %s175, 0
      %s178 = sadd.s32 %s177, 1
      %s179 = scalar_select %p176, %s177, %s178
      %p182 = pneg %p176
      %p183 = scmp.eq.s32.totalorder %s13, 7
      %p184 = por %p182, %p183
      %p185 = scmp.ne.s32.totalorder %s177, %s180
      %p186 = scmp.eq.s32.totalorder %s13, 0
      %p187 = por %p185, %p186
      %p188 = scmp.ne.s32.totalorder %s177, %s180
      %p189 = scmp.eq.s32.totalorder %s18, 7
      %p190 = por %p188, %p189
      %p191 = scmp.ne.s32.totalorder %s180, %s181
      %p192 = scmp.eq.s32.totalorder %s18, 0
      %p193 = por %p191, %p192
      %p194 = scmp.ne.s32.totalorder %s180, %s181
      %p195 = scmp.eq.s32.totalorder %s19, 7
      %p196 = por %p194, %p195
      %p198 = scmp.ne.s32.totalorder %s181, %s197
      %p199 = scmp.eq.s32.totalorder %s19, 0
      %p200 = por %p198, %p199
      %s201 = ssub.s32 %s20, %s32
      %s202 = ssub.s32 %s21, %s28
      %s203 = sor.u32 %s201, %s202
      %p204 = scmp.eq.s32.totalorder %s203, 0
      %s206 = sadd.s32 %s205, 1
      %s207 = scalar_select %p204, %s205, %s206
      %p210 = pneg %p204
      %p211 = scmp.eq.s32.totalorder %s13, 7
      %p212 = por %p210, %p211
      %p213 = scmp.ne.s32.totalorder %s205, %s208
      %p214 = scmp.eq.s32.totalorder %s13, 0
      %p215 = por %p213, %p214
      %p216 = scmp.ne.s32.totalorder %s205, %s208
      %p217 = scmp.eq.s32.totalorder %s18, 7
      %p218 = por %p216, %p217
      %p219 = scmp.ne.s32.totalorder %s208, %s209
      %p220 = scmp.eq.s32.totalorder %s18, 0
      %p221 = por %p219, %p220
      %p222 = scmp.ne.s32.totalorder %s208, %s209
      %p223 = scmp.eq.s32.totalorder %s19, 7
      %p224 = por %p222, %p223
      %p226 = scmp.ne.s32.totalorder %s209, %s225
      %p227 = scmp.eq.s32.totalorder %s19, 0
      %p228 = por %p226, %p227
      %s229 = ssub.s32 %s20, %s32
      %s230 = ssub.s32 %s21, %s28
      %s231 = sor.u32 %s229, %s230
      %p232 = scmp.eq.s32.totalorder %s231, 0
      %s234 = sadd.s32 %s233, 1
      %s235 = scalar_select %p232, %s233, %s234
      %p238 = pneg %p232
      %p239 = scmp.eq.s32.totalorder %s13, 7
      %p240 = por %p238, %p239
      %p241 = scmp.ne.s32.totalorder %s233, %s236
      %p242 = scmp.eq.s32.totalorder %s13, 0
      %p243 = por %p241, %p242
      %p244 = scmp.ne.s32.totalorder %s233, %s236
      %p245 = scmp.eq.s32.totalorder %s18, 7
      %p246 = por %p244, %p245
      %p247 = scmp.ne.s32.totalorder %s236, %s237
      %p248 = scmp.eq.s32.totalorder %s18, 0
      %p249 = por %p247, %p248
      %p250 = scmp.ne.s32.totalorder %s236, %s237
      %p251 = scmp.eq.s32.totalorder %s19, 7
      %p252 = por %p250, %p251
      %p254 = scmp.ne.s32.totalorder %s237, %s253
      %p255 = scmp.eq.s32.totalorder %s19, 0
      %p256 = por %p254, %p255
      %p257 = scmp.le.s32.totalorder 1, %s13
      %p258 = scmp.lt.s32.totalorder %s13, 9
      %p259 = pnand %p257, %p258
      %p260 = pneg %p259
      // Predicated region
      $region9: #{geo_transformation_infer.1} parent=5 // pred_check
        _
      $region10: #{geo_transformation_infer.1} parent=5 // pred_check_branch
        %262 = sbr.rel (%p259) target = $region12
      $region11: #{geo_transformation_infer.1} parent=5 // pred_region
        %s263 = ssub.s32 %s13, 1
      $region12: #{geo_transformation_infer.1} parent=5 // pred_fallthru
        _
      %p264 = scmp.lt.s32.totalorder %s13, 8
      // Predicated region
      $region13: #{geo_transformation_infer.1} parent=5 // pred_check
        %p265 = pneg %p264
      $region14: #{geo_transformation_infer.1} parent=5 // pred_check_branch
        %267 = sbr.rel (%p265) target = $region16
      $region15: #{geo_transformation_infer.1} parent=5 // pred_region
        // Predicated region
        $region17: #{geo_transformation_infer.1} parent=15 // pred_check
          %p268 = pneg %p47
        $region18: #{geo_transformation_infer.1} parent=15 // pred_check_branch
          %270 = sbr.rel (%p268) target = $region20
        $region19: #{geo_transformation_infer.1} parent=15 // pred_region
          %s271 = sand.u32 %s37, 1
          %s272 = sand.u32 %s37, 1
          %s273 = smul.addr %s272, 24
          %s274 = scalar_lea.vmem [#allocation2], %s273
          %s275 = smul.addr %s20, 12
          %s276 = sadd.s32 %s21, %s275
          %s277 = smul.addr %s276, 8
          %s278 = scalar_lea.vmem %s0, %s277
          // Predicated region
          $region21: #{geo_transformation_infer.1} parent=19 // pred_check
            _
          $region22: #{geo_transformation_infer.1} parent=19 // pred_check_branch
            %280 = sbr.rel (0) target = $region24
          $region23: #{geo_transformation_infer.1} parent=19 // pred_region
            // Predicated region
            $region25: #{geo_transformation_infer.1} parent=23 // pred_check
              _
            $region26: #{geo_transformation_infer.1} parent=23 // pred_check_branch
              %282 = sbr.rel (0) target = $region28
            $region27: #{geo_transformation_infer.1} parent=23 // pred_region
              // Predicated region
              $region40: #{geo_transformation_infer.1} parent=27 // pred_check
                _
              $region41: #{geo_transformation_infer.1} parent=27 // pred_check_branch
                %301 = sbr.rel (0) target = $region43
              $region42: #{geo_transformation_infer.1} parent=27 // pred_region
                loop: start=0, step=1, limit=1
                $region44: #{geo_transformation_infer.1} parent=42 // loop_pre_header
                  _
                $region45: #{geo_transformation_infer.1} parent=42 // loop_header
                  %s303 = sphi 0, %s307
                  %p304 = scmp.ge.s32.totalorder %s303, 1
                  %s308 = sphi %s278, %s278
                  %s309 = sphi %s274, %s274
                $region46: #{geo_transformation_infer.1} parent=42 // loop_header_branch
                  %306 = sbr.rel (%p304) target = $region50
                $region47: #{geo_transformation_infer.1} parent=42 // loop_body
                  %v310 = vld [vmem:[%s308] sm:$0xff]
                  %311 = vst [vmem:[%s309] sm:$0xff] %v310
                  %v312 = vld [vmem:[%s308 + $0x20] sm:$0xff]
                  %313 = vst [vmem:[%s309 + $0x8] sm:$0xff] %v312
                  %v314 = vld [vmem:[%s308 + $0x40] sm:$0xff]
                  %315 = vst [vmem:[%s309 + $0x10] sm:$0xff] %v314
                $region48: #{geo_transformation_infer.1} parent=42 // loop_footer
                  %s307 = sadd.s32 1, %s303
                $region49: #{geo_transformation_infer.1} parent=42 // loop_footer_branch
                  %302 = sbr.rel target = $region45
                $region50: #{geo_transformation_infer.1} parent=42 // loop_exit
                  _
              $region43: #{geo_transformation_infer.1} parent=27 // pred_fallthru
                _
              // Predicated region
              $region51: #{geo_transformation_infer.1} parent=27 // pred_check
                _
              $region52: #{geo_transformation_infer.1} parent=27 // pred_check_branch
                %317 = sbr.rel target = $region54
              $region53: #{geo_transformation_infer.1} parent=27 // pred_region
                _
              $region54: #{geo_transformation_infer.1} parent=27 // pred_fallthru
                _
            $region28: #{geo_transformation_infer.1} parent=23 // pred_fallthru
              _
            // Predicated region
            $region29: #{geo_transformation_infer.1} parent=23 // pred_check
              _
            $region30: #{geo_transformation_infer.1} parent=23 // pred_check_branch
              %284 = sbr.rel target = $region32
            $region31: #{geo_transformation_infer.1} parent=23 // pred_region
              loop: start=0, step=1, limit=1
              $region33: #{geo_transformation_infer.1} parent=31 // loop_pre_header
                _
              $region34: #{geo_transformation_infer.1} parent=31 // loop_header
                %s287 = sphi 0, %s291
                %p288 = scmp.ge.s32.totalorder %s287, 1
                %s292 = sphi %s278, %s278
                %s293 = sphi %s274, %s274
              $region35: #{geo_transformation_infer.1} parent=31 // loop_header_branch
                %290 = sbr.rel (%p288) target = $region39
              $region36: #{geo_transformation_infer.1} parent=31 // loop_body
                %v294 = vld [vmem:[%s292] sm:$0xff]
                %295 = vst [vmem:[%s293] sm:$0xff] %v294
                %v296 = vld [vmem:[%s292 + $0x20] sm:$0xff]
                %297 = vst [vmem:[%s293 + $0x8] sm:$0xff] %v296
                %v298 = vld [vmem:[%s292 + $0x40] sm:$0xff]
                %299 = vst [vmem:[%s293 + $0x10] sm:$0xff] %v298
              $region37: #{geo_transformation_infer.1} parent=31 // loop_footer
                %s291 = sadd.s32 1, %s287
              $region38: #{geo_transformation_infer.1} parent=31 // loop_footer_branch
                %286 = sbr.rel target = $region34
              $region39: #{geo_transformation_infer.1} parent=31 // loop_exit
                _
            $region32: #{geo_transformation_infer.1} parent=23 // pred_fallthru
              _
          $region24: #{geo_transformation_infer.1} parent=19 // pred_fallthru
            _
          %318 = vnop
        $region20: #{geo_transformation_infer.1} parent=15 // pred_fallthru
          _
        // Predicated region
        $region55: #{geo_transformation_infer.1} parent=15 // pred_check
          %p319 = pneg %p75
        $region56: #{geo_transformation_infer.1} parent=15 // pred_check_branch
          %321 = sbr.rel (%p319) target = $region58
        $region57: #{geo_transformation_infer.1} parent=15 // pred_region
          %s322 = sand.u32 %s65, 1
          %s323 = sand.u32 %s65, 1
          %s324 = smul.addr %s323, 24
          %s325 = scalar_lea.vmem [#allocation3], %s324
          %s326 = smul.addr %s20, 12
          %s327 = sadd.s32 %s21, %s326
          %s328 = smul.addr %s327, 8
          %s329 = scalar_lea.vmem %s1, %s328
          // Predicated region
          $region59: #{geo_transformation_infer.1} parent=57 // pred_check
            _
          $region60: #{geo_transformation_infer.1} parent=57 // pred_check_branch
            %331 = sbr.rel (0) target = $region62
          $region61: #{geo_transformation_infer.1} parent=57 // pred_region
            // Predicated region
            $region63: #{geo_transformation_infer.1} parent=61 // pred_check
              _
            $region64: #{geo_transformation_infer.1} parent=61 // pred_check_branch
              %333 = sbr.rel (0) target = $region66
            $region65: #{geo_transformation_infer.1} parent=61 // pred_region
              // Predicated region
              $region78: #{geo_transformation_infer.1} parent=65 // pred_check
                _
              $region79: #{geo_transformation_infer.1} parent=65 // pred_check_branch
                %352 = sbr.rel (0) target = $region81
              $region80: #{geo_transformation_infer.1} parent=65 // pred_region
                loop: start=0, step=1, limit=1
                $region82: #{geo_transformation_infer.1} parent=80 // loop_pre_header
                  _
                $region83: #{geo_transformation_infer.1} parent=80 // loop_header
                  %s354 = sphi 0, %s358
                  %p355 = scmp.ge.s32.totalorder %s354, 1
                  %s359 = sphi %s329, %s329
                  %s360 = sphi %s325, %s325
                $region84: #{geo_transformation_infer.1} parent=80 // loop_header_branch
                  %357 = sbr.rel (%p355) target = $region88
                $region85: #{geo_transformation_infer.1} parent=80 // loop_body
                  %v361 = vld [vmem:[%s359] sm:$0xff]
                  %362 = vst [vmem:[%s360] sm:$0xff] %v361
                  %v363 = vld [vmem:[%s359 + $0x20] sm:$0xff]
                  %364 = vst [vmem:[%s360 + $0x8] sm:$0xff] %v363
                  %v365 = vld [vmem:[%s359 + $0x40] sm:$0xff]
                  %366 = vst [vmem:[%s360 + $0x10] sm:$0xff] %v365
                $region86: #{geo_transformation_infer.1} parent=80 // loop_footer
                  %s358 = sadd.s32 1, %s354
                $region87: #{geo_transformation_infer.1} parent=80 // loop_footer_branch
                  %353 = sbr.rel target = $region83
                $region88: #{geo_transformation_infer.1} parent=80 // loop_exit
                  _
              $region81: #{geo_transformation_infer.1} parent=65 // pred_fallthru
                _
              // Predicated region
              $region89: #{geo_transformation_infer.1} parent=65 // pred_check
                _
              $region90: #{geo_transformation_infer.1} parent=65 // pred_check_branch
                %368 = sbr.rel target = $region92
              $region91: #{geo_transformation_infer.1} parent=65 // pred_region
                _
              $region92: #{geo_transformation_infer.1} parent=65 // pred_fallthru
                _
            $region66: #{geo_transformation_infer.1} parent=61 // pred_fallthru
              _
            // Predicated region
            $region67: #{geo_transformation_infer.1} parent=61 // pred_check
              _
            $region68: #{geo_transformation_infer.1} parent=61 // pred_check_branch
              %335 = sbr.rel target = $region70
            $region69: #{geo_transformation_infer.1} parent=61 // pred_region
              loop: start=0, step=1, limit=1
              $region71: #{geo_transformation_infer.1} parent=69 // loop_pre_header
                _
              $region72: #{geo_transformation_infer.1} parent=69 // loop_header
                %s338 = sphi 0, %s342
                %p339 = scmp.ge.s32.totalorder %s338, 1
                %s343 = sphi %s329, %s329
                %s344 = sphi %s325, %s325
              $region73: #{geo_transformation_infer.1} parent=69 // loop_header_branch
                %341 = sbr.rel (%p339) target = $region77
              $region74: #{geo_transformation_infer.1} parent=69 // loop_body
                %v345 = vld [vmem:[%s343] sm:$0xff]
                %346 = vst [vmem:[%s344] sm:$0xff] %v345
                %v347 = vld [vmem:[%s343 + $0x20] sm:$0xff]
                %348 = vst [vmem:[%s344 + $0x8] sm:$0xff] %v347
                %v349 = vld [vmem:[%s343 + $0x40] sm:$0xff]
                %350 = vst [vmem:[%s344 + $0x10] sm:$0xff] %v349
              $region75: #{geo_transformation_infer.1} parent=69 // loop_footer
                %s342 = sadd.s32 1, %s338
              $region76: #{geo_transformation_infer.1} parent=69 // loop_footer_branch
                %337 = sbr.rel target = $region72
              $region77: #{geo_transformation_infer.1} parent=69 // loop_exit
                _
            $region70: #{geo_transformation_infer.1} parent=61 // pred_fallthru
              _
          $region62: #{geo_transformation_infer.1} parent=57 // pred_fallthru
            _
          %369 = vnop
        $region58: #{geo_transformation_infer.1} parent=15 // pred_fallthru
          _
        // Predicated region
        $region93: #{geo_transformation_infer.1} parent=15 // pred_check
          %p370 = pneg %p103
        $region94: #{geo_transformation_infer.1} parent=15 // pred_check_branch
          %372 = sbr.rel (%p370) target = $region96
        $region95: #{geo_transformation_infer.1} parent=15 // pred_region
          %s373 = sand.u32 %s93, 1
          %s374 = sand.u32 %s93, 1
          %s375 = smul.addr %s374, 24
          %s376 = scalar_lea.vmem [#allocation4], %s375
          %s377 = smul.addr %s20, 12
          %s378 = sadd.s32 %s21, %s377
          %s379 = smul.addr %s378, 8
          %s380 = scalar_lea.vmem %s2, %s379
          // Predicated region
          $region97: #{geo_transformation_infer.1} parent=95 // pred_check
            _
          $region98: #{geo_transformation_infer.1} parent=95 // pred_check_branch
            %382 = sbr.rel (0) target = $region100
          $region99: #{geo_transformation_infer.1} parent=95 // pred_region
            // Predicated region
            $region101: #{geo_transformation_infer.1} parent=99 // pred_check
              _
            $region102: #{geo_transformation_infer.1} parent=99 // pred_check_branch
              %384 = sbr.rel (0) target = $region104
            $region103: #{geo_transformation_infer.1} parent=99 // pred_region
              // Predicated region
              $region116: #{geo_transformation_infer.1} parent=103 // pred_check
                _
              $region117: #{geo_transformation_infer.1} parent=103 // pred_check_branch
                %403 = sbr.rel (0) target = $region119
              $region118: #{geo_transformation_infer.1} parent=103 // pred_region
                loop: start=0, step=1, limit=1
                $region120: #{geo_transformation_infer.1} parent=118 // loop_pre_header
                  _
                $region121: #{geo_transformation_infer.1} parent=118 // loop_header
                  %s405 = sphi 0, %s409
                  %p406 = scmp.ge.s32.totalorder %s405, 1
                  %s410 = sphi %s380, %s380
                  %s411 = sphi %s376, %s376
                $region122: #{geo_transformation_infer.1} parent=118 // loop_header_branch
                  %408 = sbr.rel (%p406) target = $region126
                $region123: #{geo_transformation_infer.1} parent=118 // loop_body
                  %v412 = vld [vmem:[%s410] sm:$0xff]
                  %413 = vst [vmem:[%s411] sm:$0xff] %v412
                  %v414 = vld [vmem:[%s410 + $0x20] sm:$0xff]
                  %415 = vst [vmem:[%s411 + $0x8] sm:$0xff] %v414
                  %v416 = vld [vmem:[%s410 + $0x40] sm:$0xff]
                  %417 = vst [vmem:[%s411 + $0x10] sm:$0xff] %v416
                $region124: #{geo_transformation_infer.1} parent=118 // loop_footer
                  %s409 = sadd.s32 1, %s405
                $region125: #{geo_transformation_infer.1} parent=118 // loop_footer_branch
                  %404 = sbr.rel target = $region121
                $region126: #{geo_transformation_infer.1} parent=118 // loop_exit
                  _
              $region119: #{geo_transformation_infer.1} parent=103 // pred_fallthru
                _
              // Predicated region
              $region127: #{geo_transformation_infer.1} parent=103 // pred_check
                _
              $region128: #{geo_transformation_infer.1} parent=103 // pred_check_branch
                %419 = sbr.rel target = $region130
              $region129: #{geo_transformation_infer.1} parent=103 // pred_region
                _
              $region130: #{geo_transformation_infer.1} parent=103 // pred_fallthru
                _
            $region104: #{geo_transformation_infer.1} parent=99 // pred_fallthru
              _
            // Predicated region
            $region105: #{geo_transformation_infer.1} parent=99 // pred_check
              _
            $region106: #{geo_transformation_infer.1} parent=99 // pred_check_branch
              %386 = sbr.rel target = $region108
            $region107: #{geo_transformation_infer.1} parent=99 // pred_region
              loop: start=0, step=1, limit=1
              $region109: #{geo_transformation_infer.1} parent=107 // loop_pre_header
                _
              $region110: #{geo_transformation_infer.1} parent=107 // loop_header
                %s389 = sphi 0, %s393
                %p390 = scmp.ge.s32.totalorder %s389, 1
                %s394 = sphi %s380, %s380
                %s395 = sphi %s376, %s376
              $region111: #{geo_transformation_infer.1} parent=107 // loop_header_branch
                %392 = sbr.rel (%p390) target = $region115
              $region112: #{geo_transformation_infer.1} parent=107 // loop_body
                %v396 = vld [vmem:[%s394] sm:$0xff]
                %397 = vst [vmem:[%s395] sm:$0xff] %v396
                %v398 = vld [vmem:[%s394 + $0x20] sm:$0xff]
                %399 = vst [vmem:[%s395 + $0x8] sm:$0xff] %v398
                %v400 = vld [vmem:[%s394 + $0x40] sm:$0xff]
                %401 = vst [vmem:[%s395 + $0x10] sm:$0xff] %v400
              $region113: #{geo_transformation_infer.1} parent=107 // loop_footer
                %s393 = sadd.s32 1, %s389
              $region114: #{geo_transformation_infer.1} parent=107 // loop_footer_branch
                %388 = sbr.rel target = $region110
              $region115: #{geo_transformation_infer.1} parent=107 // loop_exit
                _
            $region108: #{geo_transformation_infer.1} parent=99 // pred_fallthru
              _
          $region100: #{geo_transformation_infer.1} parent=95 // pred_fallthru
            _
          %420 = vnop
        $region96: #{geo_transformation_infer.1} parent=15 // pred_fallthru
          _
        // Predicated region
        $region131: #{geo_transformation_infer.1} parent=15 // pred_check
          %p421 = pneg %p131
        $region132: #{geo_transformation_infer.1} parent=15 // pred_check_branch
          %423 = sbr.rel (%p421) target = $region134
        $region133: #{geo_transformation_infer.1} parent=15 // pred_region
          %s424 = sand.u32 %s121, 1
          %s425 = sand.u32 %s121, 1
          %s426 = smul.addr %s425, 24
          %s427 = scalar_lea.vmem [#allocation5], %s426
          %s428 = smul.addr %s20, 12
          %s429 = sadd.s32 %s21, %s428
          %s430 = smul.addr %s429, 8
          %s431 = scalar_lea.vmem %s3, %s430
          // Predicated region
          $region135: #{geo_transformation_infer.1} parent=133 // pred_check
            _
          $region136: #{geo_transformation_infer.1} parent=133 // pred_check_branch
            %433 = sbr.rel (0) target = $region138
          $region137: #{geo_transformation_infer.1} parent=133 // pred_region
            // Predicated region
            $region139: #{geo_transformation_infer.1} parent=137 // pred_check
              _
            $region140: #{geo_transformation_infer.1} parent=137 // pred_check_branch
              %435 = sbr.rel (0) target = $region142
            $region141: #{geo_transformation_infer.1} parent=137 // pred_region
              // Predicated region
              $region154: #{geo_transformation_infer.1} parent=141 // pred_check
                _
              $region155: #{geo_transformation_infer.1} parent=141 // pred_check_branch
                %454 = sbr.rel (0) target = $region157
              $region156: #{geo_transformation_infer.1} parent=141 // pred_region
                loop: start=0, step=1, limit=1
                $region158: #{geo_transformation_infer.1} parent=156 // loop_pre_header
                  _
                $region159: #{geo_transformation_infer.1} parent=156 // loop_header
                  %s456 = sphi 0, %s460
                  %p457 = scmp.ge.s32.totalorder %s456, 1
                  %s461 = sphi %s431, %s431
                  %s462 = sphi %s427, %s427
                $region160: #{geo_transformation_infer.1} parent=156 // loop_header_branch
                  %459 = sbr.rel (%p457) target = $region164
                $region161: #{geo_transformation_infer.1} parent=156 // loop_body
                  %v463 = vld [vmem:[%s461] sm:$0xff]
                  %464 = vst [vmem:[%s462] sm:$0xff] %v463
                  %v465 = vld [vmem:[%s461 + $0x20] sm:$0xff]
                  %466 = vst [vmem:[%s462 + $0x8] sm:$0xff] %v465
                  %v467 = vld [vmem:[%s461 + $0x40] sm:$0xff]
                  %468 = vst [vmem:[%s462 + $0x10] sm:$0xff] %v467
                $region162: #{geo_transformation_infer.1} parent=156 // loop_footer
                  %s460 = sadd.s32 1, %s456
                $region163: #{geo_transformation_infer.1} parent=156 // loop_footer_branch
                  %455 = sbr.rel target = $region159
                $region164: #{geo_transformation_infer.1} parent=156 // loop_exit
                  _
              $region157: #{geo_transformation_infer.1} parent=141 // pred_fallthru
                _
              // Predicated region
              $region165: #{geo_transformation_infer.1} parent=141 // pred_check
                _
              $region166: #{geo_transformation_infer.1} parent=141 // pred_check_branch
                %470 = sbr.rel target = $region168
              $region167: #{geo_transformation_infer.1} parent=141 // pred_region
                _
              $region168: #{geo_transformation_infer.1} parent=141 // pred_fallthru
                _
            $region142: #{geo_transformation_infer.1} parent=137 // pred_fallthru
              _
            // Predicated region
            $region143: #{geo_transformation_infer.1} parent=137 // pred_check
              _
            $region144: #{geo_transformation_infer.1} parent=137 // pred_check_branch
              %437 = sbr.rel target = $region146
            $region145: #{geo_transformation_infer.1} parent=137 // pred_region
              loop: start=0, step=1, limit=1
              $region147: #{geo_transformation_infer.1} parent=145 // loop_pre_header
                _
              $region148: #{geo_transformation_infer.1} parent=145 // loop_header
                %s440 = sphi 0, %s444
                %p441 = scmp.ge.s32.totalorder %s440, 1
                %s445 = sphi %s431, %s431
                %s446 = sphi %s427, %s427
              $region149: #{geo_transformation_infer.1} parent=145 // loop_header_branch
                %443 = sbr.rel (%p441) target = $region153
              $region150: #{geo_transformation_infer.1} parent=145 // loop_body
                %v447 = vld [vmem:[%s445] sm:$0xff]
                %448 = vst [vmem:[%s446] sm:$0xff] %v447
                %v449 = vld [vmem:[%s445 + $0x20] sm:$0xff]
                %450 = vst [vmem:[%s446 + $0x8] sm:$0xff] %v449
                %v451 = vld [vmem:[%s445 + $0x40] sm:$0xff]
                %452 = vst [vmem:[%s446 + $0x10] sm:$0xff] %v451
              $region151: #{geo_transformation_infer.1} parent=145 // loop_footer
                %s444 = sadd.s32 1, %s440
              $region152: #{geo_transformation_infer.1} parent=145 // loop_footer_branch
                %439 = sbr.rel target = $region148
              $region153: #{geo_transformation_infer.1} parent=145 // loop_exit
                _
            $region146: #{geo_transformation_infer.1} parent=137 // pred_fallthru
              _
          $region138: #{geo_transformation_infer.1} parent=133 // pred_fallthru
            _
          %471 = vnop
        $region134: #{geo_transformation_infer.1} parent=15 // pred_fallthru
          _
        // Predicated region
        $region169: #{geo_transformation_infer.1} parent=15 // pred_check
          %p472 = pneg %p159
        $region170: #{geo_transformation_infer.1} parent=15 // pred_check_branch
          %474 = sbr.rel (%p472) target = $region172
        $region171: #{geo_transformation_infer.1} parent=15 // pred_region
          %s475 = sand.u32 %s149, 1
          %s476 = sand.u32 %s149, 1
          %s477 = smul.addr %s476, 24
          %s478 = scalar_lea.vmem [#allocation6], %s477
          %s479 = smul.addr %s20, 12
          %s480 = sadd.s32 %s21, %s479
          %s481 = smul.addr %s480, 8
          %s482 = scalar_lea.vmem %s4, %s481
          // Predicated region
          $region173: #{geo_transformation_infer.1} parent=171 // pred_check
            _
          $region174: #{geo_transformation_infer.1} parent=171 // pred_check_branch
            %484 = sbr.rel (0) target = $region176
          $region175: #{geo_transformation_infer.1} parent=171 // pred_region
            // Predicated region
            $region177: #{geo_transformation_infer.1} parent=175 // pred_check
              _
            $region178: #{geo_transformation_infer.1} parent=175 // pred_check_branch
              %486 = sbr.rel (0) target = $region180
            $region179: #{geo_transformation_infer.1} parent=175 // pred_region
              // Predicated region
              $region192: #{geo_transformation_infer.1} parent=179 // pred_check
                _
              $region193: #{geo_transformation_infer.1} parent=179 // pred_check_branch
                %505 = sbr.rel (0) target = $region195
              $region194: #{geo_transformation_infer.1} parent=179 // pred_region
                loop: start=0, step=1, limit=1
                $region196: #{geo_transformation_infer.1} parent=194 // loop_pre_header
                  _
                $region197: #{geo_transformation_infer.1} parent=194 // loop_header
                  %s507 = sphi 0, %s511
                  %p508 = scmp.ge.s32.totalorder %s507, 1
                  %s512 = sphi %s482, %s482
                  %s513 = sphi %s478, %s478
                $region198: #{geo_transformation_infer.1} parent=194 // loop_header_branch
                  %510 = sbr.rel (%p508) target = $region202
                $region199: #{geo_transformation_infer.1} parent=194 // loop_body
                  %v514 = vld [vmem:[%s512] sm:$0xff]
                  %515 = vst [vmem:[%s513] sm:$0xff] %v514
                  %v516 = vld [vmem:[%s512 + $0x20] sm:$0xff]
                  %517 = vst [vmem:[%s513 + $0x8] sm:$0xff] %v516
                  %v518 = vld [vmem:[%s512 + $0x40] sm:$0xff]
                  %519 = vst [vmem:[%s513 + $0x10] sm:$0xff] %v518
                $region200: #{geo_transformation_infer.1} parent=194 // loop_footer
                  %s511 = sadd.s32 1, %s507
                $region201: #{geo_transformation_infer.1} parent=194 // loop_footer_branch
                  %506 = sbr.rel target = $region197
                $region202: #{geo_transformation_infer.1} parent=194 // loop_exit
                  _
              $region195: #{geo_transformation_infer.1} parent=179 // pred_fallthru
                _
              // Predicated region
              $region203: #{geo_transformation_infer.1} parent=179 // pred_check
                _
              $region204: #{geo_transformation_infer.1} parent=179 // pred_check_branch
                %521 = sbr.rel target = $region206
              $region205: #{geo_transformation_infer.1} parent=179 // pred_region
                _
              $region206: #{geo_transformation_infer.1} parent=179 // pred_fallthru
                _
            $region180: #{geo_transformation_infer.1} parent=175 // pred_fallthru
              _
            // Predicated region
            $region181: #{geo_transformation_infer.1} parent=175 // pred_check
              _
            $region182: #{geo_transformation_infer.1} parent=175 // pred_check_branch
              %488 = sbr.rel target = $region184
            $region183: #{geo_transformation_infer.1} parent=175 // pred_region
              loop: start=0, step=1, limit=1
              $region185: #{geo_transformation_infer.1} parent=183 // loop_pre_header
                _
              $region186: #{geo_transformation_infer.1} parent=183 // loop_header
                %s491 = sphi 0, %s495
                %p492 = scmp.ge.s32.totalorder %s491, 1
                %s496 = sphi %s482, %s482
                %s497 = sphi %s478, %s478
              $region187: #{geo_transformation_infer.1} parent=183 // loop_header_branch
                %494 = sbr.rel (%p492) target = $region191
              $region188: #{geo_transformation_infer.1} parent=183 // loop_body
                %v498 = vld [vmem:[%s496] sm:$0xff]
                %499 = vst [vmem:[%s497] sm:$0xff] %v498
                %v500 = vld [vmem:[%s496 + $0x20] sm:$0xff]
                %501 = vst [vmem:[%s497 + $0x8] sm:$0xff] %v500
                %v502 = vld [vmem:[%s496 + $0x40] sm:$0xff]
                %503 = vst [vmem:[%s497 + $0x10] sm:$0xff] %v502
              $region189: #{geo_transformation_infer.1} parent=183 // loop_footer
                %s495 = sadd.s32 1, %s491
              $region190: #{geo_transformation_infer.1} parent=183 // loop_footer_branch
                %490 = sbr.rel target = $region186
              $region191: #{geo_transformation_infer.1} parent=183 // loop_exit
                _
            $region184: #{geo_transformation_infer.1} parent=175 // pred_fallthru
              _
          $region176: #{geo_transformation_infer.1} parent=171 // pred_fallthru
            _
          %522 = vnop
        $region172: #{geo_transformation_infer.1} parent=15 // pred_fallthru
          _
        // Predicated region
        $region207: #{geo_transformation_infer.1} parent=15 // pred_check
          %p523 = pneg %p187
        $region208: #{geo_transformation_infer.1} parent=15 // pred_check_branch
          %525 = sbr.rel (%p523) target = $region210
        $region209: #{geo_transformation_infer.1} parent=15 // pred_region
          %s526 = sand.u32 %s177, 1
          %s527 = sand.u32 %s177, 1
          %s528 = smul.addr %s527, 24
          %s529 = scalar_lea.vmem [#allocation7], %s528
          %s530 = smul.addr %s20, 12
          %s531 = sadd.s32 %s21, %s530
          %s532 = smul.addr %s531, 8
          %s533 = scalar_lea.vmem %s5, %s532
          // Predicated region
          $region211: #{geo_transformation_infer.1} parent=209 // pred_check
            _
          $region212: #{geo_transformation_infer.1} parent=209 // pred_check_branch
            %535 = sbr.rel (0) target = $region214
          $region213: #{geo_transformation_infer.1} parent=209 // pred_region
            // Predicated region
            $region215: #{geo_transformation_infer.1} parent=213 // pred_check
              _
            $region216: #{geo_transformation_infer.1} parent=213 // pred_check_branch
              %537 = sbr.rel (0) target = $region218
            $region217: #{geo_transformation_infer.1} parent=213 // pred_region
              // Predicated region
              $region230: #{geo_transformation_infer.1} parent=217 // pred_check
                _
              $region231: #{geo_transformation_infer.1} parent=217 // pred_check_branch
                %556 = sbr.rel (0) target = $region233
              $region232: #{geo_transformation_infer.1} parent=217 // pred_region
                loop: start=0, step=1, limit=1
                $region234: #{geo_transformation_infer.1} parent=232 // loop_pre_header
                  _
                $region235: #{geo_transformation_infer.1} parent=232 // loop_header
                  %s558 = sphi 0, %s562
                  %p559 = scmp.ge.s32.totalorder %s558, 1
                  %s563 = sphi %s533, %s533
                  %s564 = sphi %s529, %s529
                $region236: #{geo_transformation_infer.1} parent=232 // loop_header_branch
                  %561 = sbr.rel (%p559) target = $region240
                $region237: #{geo_transformation_infer.1} parent=232 // loop_body
                  %v565 = vld [vmem:[%s563] sm:$0xff]
                  %566 = vst [vmem:[%s564] sm:$0xff] %v565
                  %v567 = vld [vmem:[%s563 + $0x20] sm:$0xff]
                  %568 = vst [vmem:[%s564 + $0x8] sm:$0xff] %v567
                  %v569 = vld [vmem:[%s563 + $0x40] sm:$0xff]
                  %570 = vst [vmem:[%s564 + $0x10] sm:$0xff] %v569
                $region238: #{geo_transformation_infer.1} parent=232 // loop_footer
                  %s562 = sadd.s32 1, %s558
                $region239: #{geo_transformation_infer.1} parent=232 // loop_footer_branch
                  %557 = sbr.rel target = $region235
                $region240: #{geo_transformation_infer.1} parent=232 // loop_exit
                  _
              $region233: #{geo_transformation_infer.1} parent=217 // pred_fallthru
                _
              // Predicated region
              $region241: #{geo_transformation_infer.1} parent=217 // pred_check
                _
              $region242: #{geo_transformation_infer.1} parent=217 // pred_check_branch
                %572 = sbr.rel target = $region244
              $region243: #{geo_transformation_infer.1} parent=217 // pred_region
                _
              $region244: #{geo_transformation_infer.1} parent=217 // pred_fallthru
                _
            $region218: #{geo_transformation_infer.1} parent=213 // pred_fallthru
              _
            // Predicated region
            $region219: #{geo_transformation_infer.1} parent=213 // pred_check
              _
            $region220: #{geo_transformation_infer.1} parent=213 // pred_check_branch
              %539 = sbr.rel target = $region222
            $region221: #{geo_transformation_infer.1} parent=213 // pred_region
              loop: start=0, step=1, limit=1
              $region223: #{geo_transformation_infer.1} parent=221 // loop_pre_header
                _
              $region224: #{geo_transformation_infer.1} parent=221 // loop_header
                %s542 = sphi 0, %s546
                %p543 = scmp.ge.s32.totalorder %s542, 1
                %s547 = sphi %s533, %s533
                %s548 = sphi %s529, %s529
              $region225: #{geo_transformation_infer.1} parent=221 // loop_header_branch
                %545 = sbr.rel (%p543) target = $region229
              $region226: #{geo_transformation_infer.1} parent=221 // loop_body
                %v549 = vld [vmem:[%s547] sm:$0xff]
                %550 = vst [vmem:[%s548] sm:$0xff] %v549
                %v551 = vld [vmem:[%s547 + $0x20] sm:$0xff]
                %552 = vst [vmem:[%s548 + $0x8] sm:$0xff] %v551
                %v553 = vld [vmem:[%s547 + $0x40] sm:$0xff]
                %554 = vst [vmem:[%s548 + $0x10] sm:$0xff] %v553
              $region227: #{geo_transformation_infer.1} parent=221 // loop_footer
                %s546 = sadd.s32 1, %s542
              $region228: #{geo_transformation_infer.1} parent=221 // loop_footer_branch
                %541 = sbr.rel target = $region224
              $region229: #{geo_transformation_infer.1} parent=221 // loop_exit
                _
            $region222: #{geo_transformation_infer.1} parent=213 // pred_fallthru
              _
          $region214: #{geo_transformation_infer.1} parent=209 // pred_fallthru
            _
          %573 = vnop
        $region210: #{geo_transformation_infer.1} parent=15 // pred_fallthru
          _
        // Predicated region
        $region245: #{geo_transformation_infer.1} parent=15 // pred_check
          %p574 = pneg %p215
        $region246: #{geo_transformation_infer.1} parent=15 // pred_check_branch
          %576 = sbr.rel (%p574) target = $region248
        $region247: #{geo_transformation_infer.1} parent=15 // pred_region
          %s577 = sand.u32 %s205, 1
          %s578 = sand.u32 %s205, 1
          %s579 = smul.addr %s578, 24
          %s580 = scalar_lea.vmem [#allocation8], %s579
          %s581 = smul.addr %s20, 12
          %s582 = sadd.s32 %s21, %s581
          %s583 = smul.addr %s582, 8
          %s584 = scalar_lea.vmem %s6, %s583
          // Predicated region
          $region249: #{geo_transformation_infer.1} parent=247 // pred_check
            _
          $region250: #{geo_transformation_infer.1} parent=247 // pred_check_branch
            %586 = sbr.rel (0) target = $region252
          $region251: #{geo_transformation_infer.1} parent=247 // pred_region
            // Predicated region
            $region253: #{geo_transformation_infer.1} parent=251 // pred_check
              _
            $region254: #{geo_transformation_infer.1} parent=251 // pred_check_branch
              %588 = sbr.rel (0) target = $region256
            $region255: #{geo_transformation_infer.1} parent=251 // pred_region
              // Predicated region
              $region268: #{geo_transformation_infer.1} parent=255 // pred_check
                _
              $region269: #{geo_transformation_infer.1} parent=255 // pred_check_branch
                %607 = sbr.rel (0) target = $region271
              $region270: #{geo_transformation_infer.1} parent=255 // pred_region
                loop: start=0, step=1, limit=1
                $region272: #{geo_transformation_infer.1} parent=270 // loop_pre_header
                  _
                $region273: #{geo_transformation_infer.1} parent=270 // loop_header
                  %s609 = sphi 0, %s613
                  %p610 = scmp.ge.s32.totalorder %s609, 1
                  %s614 = sphi %s584, %s584
                  %s615 = sphi %s580, %s580
                $region274: #{geo_transformation_infer.1} parent=270 // loop_header_branch
                  %612 = sbr.rel (%p610) target = $region278
                $region275: #{geo_transformation_infer.1} parent=270 // loop_body
                  %v616 = vld [vmem:[%s614] sm:$0xff]
                  %617 = vst [vmem:[%s615] sm:$0xff] %v616
                  %v618 = vld [vmem:[%s614 + $0x20] sm:$0xff]
                  %619 = vst [vmem:[%s615 + $0x8] sm:$0xff] %v618
                  %v620 = vld [vmem:[%s614 + $0x40] sm:$0xff]
                  %621 = vst [vmem:[%s615 + $0x10] sm:$0xff] %v620
                $region276: #{geo_transformation_infer.1} parent=270 // loop_footer
                  %s613 = sadd.s32 1, %s609
                $region277: #{geo_transformation_infer.1} parent=270 // loop_footer_branch
                  %608 = sbr.rel target = $region273
                $region278: #{geo_transformation_infer.1} parent=270 // loop_exit
                  _
              $region271: #{geo_transformation_infer.1} parent=255 // pred_fallthru
                _
              // Predicated region
              $region279: #{geo_transformation_infer.1} parent=255 // pred_check
                _
              $region280: #{geo_transformation_infer.1} parent=255 // pred_check_branch
                %623 = sbr.rel target = $region282
              $region281: #{geo_transformation_infer.1} parent=255 // pred_region
                _
              $region282: #{geo_transformation_infer.1} parent=255 // pred_fallthru
                _
            $region256: #{geo_transformation_infer.1} parent=251 // pred_fallthru
              _
            // Predicated region
            $region257: #{geo_transformation_infer.1} parent=251 // pred_check
              _
            $region258: #{geo_transformation_infer.1} parent=251 // pred_check_branch
              %590 = sbr.rel target = $region260
            $region259: #{geo_transformation_infer.1} parent=251 // pred_region
              loop: start=0, step=1, limit=1
              $region261: #{geo_transformation_infer.1} parent=259 // loop_pre_header
                _
              $region262: #{geo_transformation_infer.1} parent=259 // loop_header
                %s593 = sphi 0, %s597
                %p594 = scmp.ge.s32.totalorder %s593, 1
                %s598 = sphi %s584, %s584
                %s599 = sphi %s580, %s580
              $region263: #{geo_transformation_infer.1} parent=259 // loop_header_branch
                %596 = sbr.rel (%p594) target = $region267
              $region264: #{geo_transformation_infer.1} parent=259 // loop_body
                %v600 = vld [vmem:[%s598] sm:$0xff]
                %601 = vst [vmem:[%s599] sm:$0xff] %v600
                %v602 = vld [vmem:[%s598 + $0x20] sm:$0xff]
                %603 = vst [vmem:[%s599 + $0x8] sm:$0xff] %v602
                %v604 = vld [vmem:[%s598 + $0x40] sm:$0xff]
                %605 = vst [vmem:[%s599 + $0x10] sm:$0xff] %v604
              $region265: #{geo_transformation_infer.1} parent=259 // loop_footer
                %s597 = sadd.s32 1, %s593
              $region266: #{geo_transformation_infer.1} parent=259 // loop_footer_branch
                %592 = sbr.rel target = $region262
              $region267: #{geo_transformation_infer.1} parent=259 // loop_exit
                _
            $region260: #{geo_transformation_infer.1} parent=251 // pred_fallthru
              _
          $region252: #{geo_transformation_infer.1} parent=247 // pred_fallthru
            _
          %624 = vnop
        $region248: #{geo_transformation_infer.1} parent=15 // pred_fallthru
          _
      $region16: #{geo_transformation_infer.1} parent=5 // pred_fallthru
        _
      %p625 = scmp.le.s32.totalorder 1, %s13
      %p626 = scmp.lt.s32.totalorder %s13, 9
      %p627 = pnand %p625, %p626
      %p628 = pneg %p627
      // Predicated region
      $region283: #{geo_transformation_infer.1} parent=5 // pred_check
        _
      $region284: #{geo_transformation_infer.1} parent=5 // pred_check_branch
        %630 = sbr.rel (%p627) target = $region286
      $region285: #{geo_transformation_infer.1} parent=5 // pred_region
        %s631 = ssub.s32 %s13, 1
        %s632 = sand.u32 %s40, 1
        %s633 = sand.u32 %s40, 1
        %s634 = smul.addr %s633, 24
        %s635 = scalar_lea.vmem [#allocation2], %s634
        // Predicated region
        $region287: #{geo_transformation_infer.1} parent=285 // pred_check
          %p636 = pneg %p53
        $region288: #{geo_transformation_infer.1} parent=285 // pred_check_branch
          %638 = sbr.rel (%p636) target = $region290
        $region289: #{geo_transformation_infer.1} parent=285 // pred_region
          _
        $region290: #{geo_transformation_infer.1} parent=285 // pred_fallthru
          _
        %s639 = sand.u32 %s68, 1
        %s640 = sand.u32 %s68, 1
        %s641 = smul.addr %s640, 24
        %s642 = scalar_lea.vmem [#allocation3], %s641
        // Predicated region
        $region291: #{geo_transformation_infer.1} parent=285 // pred_check
          %p643 = pneg %p81
        $region292: #{geo_transformation_infer.1} parent=285 // pred_check_branch
          %645 = sbr.rel (%p643) target = $region294
        $region293: #{geo_transformation_infer.1} parent=285 // pred_region
          _
        $region294: #{geo_transformation_infer.1} parent=285 // pred_fallthru
          _
        %s646 = sand.u32 %s96, 1
        %s647 = sand.u32 %s96, 1
        %s648 = smul.addr %s647, 24
        %s649 = scalar_lea.vmem [#allocation4], %s648
        // Predicated region
        $region295: #{geo_transformation_infer.1} parent=285 // pred_check
          %p650 = pneg %p109
        $region296: #{geo_transformation_infer.1} parent=285 // pred_check_branch
          %652 = sbr.rel (%p650) target = $region298
        $region297: #{geo_transformation_infer.1} parent=285 // pred_region
          _
        $region298: #{geo_transformation_infer.1} parent=285 // pred_fallthru
          _
        %s653 = sand.u32 %s124, 1
        %s654 = sand.u32 %s124, 1
        %s655 = smul.addr %s654, 24
        %s656 = scalar_lea.vmem [#allocation5], %s655
        // Predicated region
        $region299: #{geo_transformation_infer.1} parent=285 // pred_check
          %p657 = pneg %p137
        $region300: #{geo_transformation_infer.1} parent=285 // pred_check_branch
          %659 = sbr.rel (%p657) target = $region302
        $region301: #{geo_transformation_infer.1} parent=285 // pred_region
          _
        $region302: #{geo_transformation_infer.1} parent=285 // pred_fallthru
          _
        %s660 = sand.u32 %s152, 1
        %s661 = sand.u32 %s152, 1
        %s662 = smul.addr %s661, 24
        %s663 = scalar_lea.vmem [#allocation6], %s662
        // Predicated region
        $region303: #{geo_transformation_infer.1} parent=285 // pred_check
          %p664 = pneg %p165
        $region304: #{geo_transformation_infer.1} parent=285 // pred_check_branch
          %666 = sbr.rel (%p664) target = $region306
        $region305: #{geo_transformation_infer.1} parent=285 // pred_region
          _
        $region306: #{geo_transformation_infer.1} parent=285 // pred_fallthru
          _
        %s667 = sand.u32 %s180, 1
        %s668 = sand.u32 %s180, 1
        %s669 = smul.addr %s668, 24
        %s670 = scalar_lea.vmem [#allocation7], %s669
        // Predicated region
        $region307: #{geo_transformation_infer.1} parent=285 // pred_check
          %p671 = pneg %p193
        $region308: #{geo_transformation_infer.1} parent=285 // pred_check_branch
          %673 = sbr.rel (%p671) target = $region310
        $region309: #{geo_transformation_infer.1} parent=285 // pred_region
          _
        $region310: #{geo_transformation_infer.1} parent=285 // pred_fallthru
          _
        %s674 = sand.u32 %s208, 1
        %s675 = sand.u32 %s208, 1
        %s676 = smul.addr %s675, 24
        %s677 = scalar_lea.vmem [#allocation8], %s676
        // Predicated region
        $region311: #{geo_transformation_infer.1} parent=285 // pred_check
          %p678 = pneg %p221
        $region312: #{geo_transformation_infer.1} parent=285 // pred_check_branch
          %680 = sbr.rel (%p678) target = $region314
        $region313: #{geo_transformation_infer.1} parent=285 // pred_region
          _
        $region314: #{geo_transformation_infer.1} parent=285 // pred_fallthru
          _
        %s681 = sand.u32 %s40, 1
        %s682 = sand.u32 %s40, 1
        %s683 = smul.addr %s682, 24
        %s684 = scalar_lea.vmem [#allocation2], %s683
        %p685 = pneg %p53
        %p686 = pneg %p50
        %s687 = sand.u32 %s68, 1
        %s688 = sand.u32 %s68, 1
        %s689 = smul.addr %s688, 24
        %s690 = scalar_lea.vmem [#allocation3], %s689
        %p691 = pneg %p81
        %p692 = pneg %p78
        %s693 = sand.u32 %s96, 1
        %s694 = sand.u32 %s96, 1
        %s695 = smul.addr %s694, 24
        %s696 = scalar_lea.vmem [#allocation4], %s695
        %p697 = pneg %p109
        %p698 = pneg %p106
        %s699 = sand.u32 %s124, 1
        %s700 = sand.u32 %s124, 1
        %s701 = smul.addr %s700, 24
        %s702 = scalar_lea.vmem [#allocation5], %s701
        %p703 = pneg %p137
        %p704 = pneg %p134
        %s705 = sand.u32 %s152, 1
        %s706 = sand.u32 %s152, 1
        %s707 = smul.addr %s706, 24
        %s708 = scalar_lea.vmem [#allocation6], %s707
        %p709 = pneg %p165
        %p710 = pneg %p162
        %s711 = sand.u32 %s180, 1
        %s712 = sand.u32 %s180, 1
        %s713 = smul.addr %s712, 24
        %s714 = scalar_lea.vmem [#allocation7], %s713
        %p715 = pneg %p193
        %p716 = pneg %p190
        %s717 = sand.u32 %s208, 1
        %s718 = sand.u32 %s208, 1
        %s719 = smul.addr %s718, 24
        %s720 = scalar_lea.vmem [#allocation8], %s719
        %p721 = pneg %p221
        %p722 = pneg %p218
        %p723 = pneg %p249
        %p724 = pneg %p246
        %s725 = sand.u32 %s236, 1
        %s726 = sand.u32 %s236, 1
        %s727 = smul.addr %s726, 42
        %s728 = scalar_lea.vmem [#allocation9], %s727
        %v729 = vld [vmem:[%s635] sm:$0xff]
        %v730 = vmul.f32 %v729, 58.395
        %v731 = vadd.f32 %v730, 124.175
        %v732 = vmax.f32 %v731, 0.0
        %v733 = vmin.f32 %v732, 255.0
        %v734 = vcvt.f32.s32.to.zero.pseudo %v733
        %v735 = vpack.c.b16 %v734, %v734
        %v736 = vpack.c.b8 %v735, %v735
        %737 = vst [vmem:[%s728] sm:$0x3] %v736
        %s738 = scalar_lea.vmem %s635, 8 [#allocation2]
        %v739 = vld [vmem:[%s738] sm:$0xff]
        %v740 = vmul.f32 %v739, 57.12
        %v741 = vadd.f32 %v740, 116.78
        %v742 = vmax.f32 %v741, 0.0
        %v743 = vmin.f32 %v742, 255.0
        %v744 = vcvt.f32.s32.to.zero.pseudo %v743
        %v745 = vpack.c.b16 %v744, %v744
        %v746 = vpack.c.b8 %v745, %v745
        %s747 = scalar_lea.vmem %s728, 2 [#allocation9]
        %748 = vst [vmem:[%s747] sm:$0x3] %v746
        %s749 = scalar_lea.vmem %s635, 16 [#allocation2]
        %v750 = vld [vmem:[%s749] sm:$0xff]
        %v751 = vmul.f32 %v750, 57.375
        %v752 = vadd.f32 %v751, 104.03
        %v753 = vmax.f32 %v752, 0.0
        %v754 = vmin.f32 %v753, 255.0
        %v755 = vcvt.f32.s32.to.zero.pseudo %v754
        %v756 = vpack.c.b16 %v755, %v755
        %v757 = vpack.c.b8 %v756, %v756
        %s758 = scalar_lea.vmem %s728, 4 [#allocation9]
        %759 = vst [vmem:[%s758] sm:$0x3] %v757
        %v760 = vld [vmem:[%s642] sm:$0xff]
        %v761 = vmul.f32 %v760, 58.395
        %v762 = vadd.f32 %v761, 124.175
        %v763 = vmax.f32 %v762, 0.0
        %v764 = vmin.f32 %v763, 255.0
        %v765 = vcvt.f32.s32.to.zero.pseudo %v764
        %v766 = vpack.c.b16 %v765, %v765
        %v767 = vpack.c.b8 %v766, %v766
        %s768 = scalar_lea.vmem %s728, 6 [#allocation9]
        %769 = vst [vmem:[%s768] sm:$0x3] %v767
        %s770 = scalar_lea.vmem %s642, 8 [#allocation3]
        %v771 = vld [vmem:[%s770] sm:$0xff]
        %v772 = vmul.f32 %v771, 57.12
        %v773 = vadd.f32 %v772, 116.78
        %v774 = vmax.f32 %v773, 0.0
        %v775 = vmin.f32 %v774, 255.0
        %v776 = vcvt.f32.s32.to.zero.pseudo %v775
        %v777 = vpack.c.b16 %v776, %v776
        %v778 = vpack.c.b8 %v777, %v777
        %s779 = scalar_lea.vmem %s728, 8 [#allocation9]
        %780 = vst [vmem:[%s779] sm:$0x3] %v778
        %s781 = scalar_lea.vmem %s642, 16 [#allocation3]
        %v782 = vld [vmem:[%s781] sm:$0xff]
        %v783 = vmul.f32 %v782, 57.375
        %v784 = vadd.f32 %v783, 104.03
        %v785 = vmax.f32 %v784, 0.0
        %v786 = vmin.f32 %v785, 255.0
        %v787 = vcvt.f32.s32.to.zero.pseudo %v786
        %v788 = vpack.c.b16 %v787, %v787
        %v789 = vpack.c.b8 %v788, %v788
        %s790 = scalar_lea.vmem %s728, 10 [#allocation9]
        %791 = vst [vmem:[%s790] sm:$0x3] %v789
        %v792 = vld [vmem:[%s649] sm:$0xff]
        %v793 = vmul.f32 %v792, 58.395
        %v794 = vadd.f32 %v793, 124.175
        %v795 = vmax.f32 %v794, 0.0
        %v796 = vmin.f32 %v795, 255.0
        %v797 = vcvt.f32.s32.to.zero.pseudo %v796
        %v798 = vpack.c.b16 %v797, %v797
        %v799 = vpack.c.b8 %v798, %v798
        %s800 = scalar_lea.vmem %s728, 12 [#allocation9]
        %801 = vst [vmem:[%s800] sm:$0x3] %v799
        %s802 = scalar_lea.vmem %s649, 8 [#allocation4]
        %v803 = vld [vmem:[%s802] sm:$0xff]
        %v804 = vmul.f32 %v803, 57.12
        %v805 = vadd.f32 %v804, 116.78
        %v806 = vmax.f32 %v805, 0.0
        %v807 = vmin.f32 %v806, 255.0
        %v808 = vcvt.f32.s32.to.zero.pseudo %v807
        %v809 = vpack.c.b16 %v808, %v808
        %v810 = vpack.c.b8 %v809, %v809
        %s811 = scalar_lea.vmem %s728, 14 [#allocation9]
        %812 = vst [vmem:[%s811] sm:$0x3] %v810
        %s813 = scalar_lea.vmem %s649, 16 [#allocation4]
        %v814 = vld [vmem:[%s813] sm:$0xff]
        %v815 = vmul.f32 %v814, 57.375
        %v816 = vadd.f32 %v815, 104.03
        %v817 = vmax.f32 %v816, 0.0
        %v818 = vmin.f32 %v817, 255.0
        %v819 = vcvt.f32.s32.to.zero.pseudo %v818
        %v820 = vpack.c.b16 %v819, %v819
        %v821 = vpack.c.b8 %v820, %v820
        %s822 = scalar_lea.vmem %s728, 16 [#allocation9]
        %823 = vst [vmem:[%s822] sm:$0x3] %v821
        %v824 = vld [vmem:[%s656] sm:$0xff]
        %v825 = vmul.f32 %v824, 58.395
        %v826 = vadd.f32 %v825, 124.175
        %v827 = vmax.f32 %v826, 0.0
        %v828 = vmin.f32 %v827, 255.0
        %v829 = vcvt.f32.s32.to.zero.pseudo %v828
        %v830 = vpack.c.b16 %v829, %v829
        %v831 = vpack.c.b8 %v830, %v830
        %s832 = scalar_lea.vmem %s728, 18 [#allocation9]
        %833 = vst [vmem:[%s832] sm:$0x3] %v831
        %s834 = scalar_lea.vmem %s656, 8 [#allocation5]
        %v835 = vld [vmem:[%s834] sm:$0xff]
        %v836 = vmul.f32 %v835, 57.12
        %v837 = vadd.f32 %v836, 116.78
        %v838 = vmax.f32 %v837, 0.0
        %v839 = vmin.f32 %v838, 255.0
        %v840 = vcvt.f32.s32.to.zero.pseudo %v839
        %v841 = vpack.c.b16 %v840, %v840
        %v842 = vpack.c.b8 %v841, %v841
        %s843 = scalar_lea.vmem %s728, 20 [#allocation9]
        %844 = vst [vmem:[%s843] sm:$0x3] %v842
        %s845 = scalar_lea.vmem %s656, 16 [#allocation5]
        %v846 = vld [vmem:[%s845] sm:$0xff]
        %v847 = vmul.f32 %v846, 57.375
        %v848 = vadd.f32 %v847, 104.03
        %v849 = vmax.f32 %v848, 0.0
        %v850 = vmin.f32 %v849, 255.0
        %v851 = vcvt.f32.s32.to.zero.pseudo %v850
        %v852 = vpack.c.b16 %v851, %v851
        %v853 = vpack.c.b8 %v852, %v852
        %s854 = scalar_lea.vmem %s728, 22 [#allocation9]
        %855 = vst [vmem:[%s854] sm:$0x3] %v853
        %v856 = vld [vmem:[%s663] sm:$0xff]
        %v857 = vmul.f32 %v856, 58.395
        %v858 = vadd.f32 %v857, 124.175
        %v859 = vmax.f32 %v858, 0.0
        %v860 = vmin.f32 %v859, 255.0
        %v861 = vcvt.f32.s32.to.zero.pseudo %v860
        %v862 = vpack.c.b16 %v861, %v861
        %v863 = vpack.c.b8 %v862, %v862
        %s864 = scalar_lea.vmem %s728, 24 [#allocation9]
        %865 = vst [vmem:[%s864] sm:$0x3] %v863
        %s866 = scalar_lea.vmem %s663, 8 [#allocation6]
        %v867 = vld [vmem:[%s866] sm:$0xff]
        %v868 = vmul.f32 %v867, 57.12
        %v869 = vadd.f32 %v868, 116.78
        %v870 = vmax.f32 %v869, 0.0
        %v871 = vmin.f32 %v870, 255.0
        %v872 = vcvt.f32.s32.to.zero.pseudo %v871
        %v873 = vpack.c.b16 %v872, %v872
        %v874 = vpack.c.b8 %v873, %v873
        %s875 = scalar_lea.vmem %s728, 26 [#allocation9]
        %876 = vst [vmem:[%s875] sm:$0x3] %v874
        %s877 = scalar_lea.vmem %s663, 16 [#allocation6]
        %v878 = vld [vmem:[%s877] sm:$0xff]
        %v879 = vmul.f32 %v878, 57.375
        %v880 = vadd.f32 %v879, 104.03
        %v881 = vmax.f32 %v880, 0.0
        %v882 = vmin.f32 %v881, 255.0
        %v883 = vcvt.f32.s32.to.zero.pseudo %v882
        %v884 = vpack.c.b16 %v883, %v883
        %v885 = vpack.c.b8 %v884, %v884
        %s886 = scalar_lea.vmem %s728, 28 [#allocation9]
        %887 = vst [vmem:[%s886] sm:$0x3] %v885
        %v888 = vld [vmem:[%s670] sm:$0xff]
        %v889 = vmul.f32 %v888, 58.395
        %v890 = vadd.f32 %v889, 124.175
        %v891 = vmax.f32 %v890, 0.0
        %v892 = vmin.f32 %v891, 255.0
        %v893 = vcvt.f32.s32.to.zero.pseudo %v892
        %v894 = vpack.c.b16 %v893, %v893
        %v895 = vpack.c.b8 %v894, %v894
        %s896 = scalar_lea.vmem %s728, 30 [#allocation9]
        %897 = vst [vmem:[%s896] sm:$0x3] %v895
        %s898 = scalar_lea.vmem %s670, 8 [#allocation7]
        %v899 = vld [vmem:[%s898] sm:$0xff]
        %v900 = vmul.f32 %v899, 57.12
        %v901 = vadd.f32 %v900, 116.78
        %v902 = vmax.f32 %v901, 0.0
        %v903 = vmin.f32 %v902, 255.0
        %v904 = vcvt.f32.s32.to.zero.pseudo %v903
        %v905 = vpack.c.b16 %v904, %v904
        %v906 = vpack.c.b8 %v905, %v905
        %s907 = scalar_lea.vmem %s728, 32 [#allocation9]
        %908 = vst [vmem:[%s907] sm:$0x3] %v906
        %s909 = scalar_lea.vmem %s670, 16 [#allocation7]
        %v910 = vld [vmem:[%s909] sm:$0xff]
        %v911 = vmul.f32 %v910, 57.375
        %v912 = vadd.f32 %v911, 104.03
        %v913 = vmax.f32 %v912, 0.0
        %v914 = vmin.f32 %v913, 255.0
        %v915 = vcvt.f32.s32.to.zero.pseudo %v914
        %v916 = vpack.c.b16 %v915, %v915
        %v917 = vpack.c.b8 %v916, %v916
        %s918 = scalar_lea.vmem %s728, 34 [#allocation9]
        %919 = vst [vmem:[%s918] sm:$0x3] %v917
        %v920 = vld [vmem:[%s677] sm:$0xff]
        %v921 = vmul.f32 %v920, 58.395
        %v922 = vadd.f32 %v921, 124.175
        %v923 = vmax.f32 %v922, 0.0
        %v924 = vmin.f32 %v923, 255.0
        %v925 = vcvt.f32.s32.to.zero.pseudo %v924
        %v926 = vpack.c.b16 %v925, %v925
        %v927 = vpack.c.b8 %v926, %v926
        %s928 = scalar_lea.vmem %s728, 36 [#allocation9]
        %929 = vst [vmem:[%s928] sm:$0x3] %v927
        %s930 = scalar_lea.vmem %s677, 8 [#allocation8]
        %v931 = vld [vmem:[%s930] sm:$0xff]
        %v932 = vmul.f32 %v931, 57.12
        %v933 = vadd.f32 %v932, 116.78
        %v934 = vmax.f32 %v933, 0.0
        %v935 = vmin.f32 %v934, 255.0
        %v936 = vcvt.f32.s32.to.zero.pseudo %v935
        %v937 = vpack.c.b16 %v936, %v936
        %v938 = vpack.c.b8 %v937, %v937
        %s939 = scalar_lea.vmem %s728, 38 [#allocation9]
        %940 = vst [vmem:[%s939] sm:$0x3] %v938
        %s941 = scalar_lea.vmem %s677, 16 [#allocation8]
        %v942 = vld [vmem:[%s941] sm:$0xff]
        %v943 = vmul.f32 %v942, 57.375
        %v944 = vadd.f32 %v943, 104.03
        %v945 = vmax.f32 %v944, 0.0
        %v946 = vmin.f32 %v945, 255.0
        %v947 = vcvt.f32.s32.to.zero.pseudo %v946
        %v948 = vpack.c.b16 %v947, %v947
        %v949 = vpack.c.b8 %v948, %v948
        %s950 = scalar_lea.vmem %s728, 40 [#allocation9]
        %951 = vst [vmem:[%s950] sm:$0x3] %v949
        %s952 = sand.u32 %s236, 1
        %s953 = sand.u32 %s236, 1
        %s954 = smul.addr %s953, 42
        %s955 = scalar_lea.vmem [#allocation9], %s954
        // Predicated region
        $region315: #{geo_transformation_infer.1} parent=285 // pred_check
          %p956 = pneg %p246
        $region316: #{geo_transformation_infer.1} parent=285 // pred_check_branch
          %958 = sbr.rel (%p956) target = $region318
        $region317: #{geo_transformation_infer.1} parent=285 // pred_region
          %s959 = smul.addr %s22, 84
          %s960 = sadd.s32 %s23, %s959
          %s961 = smul.addr %s960, 2
          %s962 = scalar_lea.vmem %s7, %s961
          // Predicated region
          $region319: #{geo_transformation_infer.1} parent=317 // pred_check
            _
          $region320: #{geo_transformation_infer.1} parent=317 // pred_check_branch
            %964 = sbr.rel (0) target = $region322
          $region321: #{geo_transformation_infer.1} parent=317 // pred_region
            // Predicated region
            $region323: #{geo_transformation_infer.1} parent=321 // pred_check
              _
            $region324: #{geo_transformation_infer.1} parent=321 // pred_check_branch
              %966 = sbr.rel target = $region326
            $region325: #{geo_transformation_infer.1} parent=321 // pred_region
              // Predicated region
              $region338: #{geo_transformation_infer.1} parent=325 // pred_check
                _
              $region339: #{geo_transformation_infer.1} parent=325 // pred_check_branch
                %1021 = sbr.rel (0) target = $region341
              $region340: #{geo_transformation_infer.1} parent=325 // pred_region
                loop: start=0, step=1, limit=1
                $region342: #{geo_transformation_infer.1} parent=340 // loop_pre_header
                  _
                $region343: #{geo_transformation_infer.1} parent=340 // loop_header
                  %s1023 = sphi 0, %s1027
                  %p1024 = scmp.ge.s32.totalorder %s1023, 1
                  %s1028 = sphi %s955, %s955
                  %s1029 = sphi %s962, %s962
                $region344: #{geo_transformation_infer.1} parent=340 // loop_header_branch
                  %1026 = sbr.rel (%p1024) target = $region348
                $region345: #{geo_transformation_infer.1} parent=340 // loop_body
                  _
                $region346: #{geo_transformation_infer.1} parent=340 // loop_footer
                  %s1027 = sadd.s32 1, %s1023
                $region347: #{geo_transformation_infer.1} parent=340 // loop_footer_branch
                  %1022 = sbr.rel target = $region343
                $region348: #{geo_transformation_infer.1} parent=340 // loop_exit
                  _
                loop: start=0, step=1, limit=1
                $region349: #{geo_transformation_infer.1} parent=340 // loop_pre_header
                  _
                $region350: #{geo_transformation_infer.1} parent=340 // loop_header
                  %s1032 = sphi 0, %s1036
                  %p1033 = scmp.ge.s32.totalorder %s1032, 1
                  %s1037 = sphi %s955, %s955
                  %s1038 = sphi %s962, %s962
                $region351: #{geo_transformation_infer.1} parent=340 // loop_header_branch
                  %1035 = sbr.rel (%p1033) target = $region355
                $region352: #{geo_transformation_infer.1} parent=340 // loop_body
                  %v1039 = vld [vmem:[%s1037] sm:$0x3]
                  %1040 = vst [vmem:[%s1038] sm:$0x3] %v1039
                  %v1041 = vld [vmem:[%s1037 + $0x2] sm:$0x3]
                  %1042 = vst [vmem:[%s1038 + $0x8] sm:$0x3] %v1041
                  %v1043 = vld [vmem:[%s1037 + $0x4] sm:$0x3]
                  %1044 = vst [vmem:[%s1038 + $0x10] sm:$0x3] %v1043
                  %v1045 = vld [vmem:[%s1037 + $0x6] sm:$0x3]
                  %1046 = vst [vmem:[%s1038 + $0x18] sm:$0x3] %v1045
                  %v1047 = vld [vmem:[%s1037 + $0x8] sm:$0x3]
                  %1048 = vst [vmem:[%s1038 + $0x20] sm:$0x3] %v1047
                  %v1049 = vld [vmem:[%s1037 + $0xa] sm:$0x3]
                  %1050 = vst [vmem:[%s1038 + $0x28] sm:$0x3] %v1049
                  %v1051 = vld [vmem:[%s1037 + $0xc] sm:$0x3]
                  %1052 = vst [vmem:[%s1038 + $0x30] sm:$0x3] %v1051
                  %v1053 = vld [vmem:[%s1037 + $0xe] sm:$0x3]
                  %1054 = vst [vmem:[%s1038 + $0x38] sm:$0x3] %v1053
                  %v1055 = vld [vmem:[%s1037 + $0x10] sm:$0x3]
                  %1056 = vst [vmem:[%s1038 + $0x40] sm:$0x3] %v1055
                  %v1057 = vld [vmem:[%s1037 + $0x12] sm:$0x3]
                  %1058 = vst [vmem:[%s1038 + $0x48] sm:$0x3] %v1057
                  %v1059 = vld [vmem:[%s1037 + $0x14] sm:$0x3]
                  %1060 = vst [vmem:[%s1038 + $0x50] sm:$0x3] %v1059
                  %v1061 = vld [vmem:[%s1037 + $0x16] sm:$0x3]
                  %1062 = vst [vmem:[%s1038 + $0x58] sm:$0x3] %v1061
                  %v1063 = vld [vmem:[%s1037 + $0x18] sm:$0x3]
                  %1064 = vst [vmem:[%s1038 + $0x60] sm:$0x3] %v1063
                  %v1065 = vld [vmem:[%s1037 + $0x1a] sm:$0x3]
                  %1066 = vst [vmem:[%s1038 + $0x68] sm:$0x3] %v1065
                  %v1067 = vld [vmem:[%s1037 + $0x1c] sm:$0x3]
                  %1068 = vst [vmem:[%s1038 + $0x70] sm:$0x3] %v1067
                  %v1069 = vld [vmem:[%s1037 + $0x1e] sm:$0x3]
                  %1070 = vst [vmem:[%s1038 + $0x78] sm:$0x3] %v1069
                  %v1071 = vld [vmem:[%s1037 + $0x20] sm:$0x3]
                  %1072 = vst [vmem:[%s1038 + $0x80] sm:$0x3] %v1071
                  %v1073 = vld [vmem:[%s1037 + $0x22] sm:$0x3]
                  %1074 = vst [vmem:[%s1038 + $0x88] sm:$0x3] %v1073
                  %v1075 = vld [vmem:[%s1037 + $0x24] sm:$0x3]
                  %1076 = vst [vmem:[%s1038 + $0x90] sm:$0x3] %v1075
                  %v1077 = vld [vmem:[%s1037 + $0x26] sm:$0x3]
                  %1078 = vst [vmem:[%s1038 + $0x98] sm:$0x3] %v1077
                  %v1079 = vld [vmem:[%s1037 + $0x28] sm:$0x3]
                  %1080 = vst [vmem:[%s1038 + $0xa0] sm:$0x3] %v1079
                $region353: #{geo_transformation_infer.1} parent=340 // loop_footer
                  %s1036 = sadd.s32 1, %s1032
                $region354: #{geo_transformation_infer.1} parent=340 // loop_footer_branch
                  %1031 = sbr.rel target = $region350
                $region355: #{geo_transformation_infer.1} parent=340 // loop_exit
                  _
              $region341: #{geo_transformation_infer.1} parent=325 // pred_fallthru
                _
            $region326: #{geo_transformation_infer.1} parent=321 // pred_fallthru
              _
            // Predicated region
            $region327: #{geo_transformation_infer.1} parent=321 // pred_check
              _
            $region328: #{geo_transformation_infer.1} parent=321 // pred_check_branch
              %968 = sbr.rel (0) target = $region330
            $region329: #{geo_transformation_infer.1} parent=321 // pred_region
              loop: start=0, step=1, limit=1
              $region331: #{geo_transformation_infer.1} parent=329 // loop_pre_header
                _
              $region332: #{geo_transformation_infer.1} parent=329 // loop_header
                %s971 = sphi 0, %s975
                %p972 = scmp.ge.s32.totalorder %s971, 1
                %s976 = sphi %s955, %s955
                %s977 = sphi %s962, %s962
              $region333: #{geo_transformation_infer.1} parent=329 // loop_header_branch
                %974 = sbr.rel (%p972) target = $region337
              $region334: #{geo_transformation_infer.1} parent=329 // loop_body
                %v978 = vld [vmem:[%s976] sm:$0x3]
                %979 = vst [vmem:[%s977] sm:$0x3] %v978
                %v980 = vld [vmem:[%s976 + $0x2] sm:$0x3]
                %981 = vst [vmem:[%s977 + $0x8] sm:$0x3] %v980
                %v982 = vld [vmem:[%s976 + $0x4] sm:$0x3]
                %983 = vst [vmem:[%s977 + $0x10] sm:$0x3] %v982
                %v984 = vld [vmem:[%s976 + $0x6] sm:$0x3]
                %985 = vst [vmem:[%s977 + $0x18] sm:$0x3] %v984
                %v986 = vld [vmem:[%s976 + $0x8] sm:$0x3]
                %987 = vst [vmem:[%s977 + $0x20] sm:$0x3] %v986
                %v988 = vld [vmem:[%s976 + $0xa] sm:$0x3]
                %989 = vst [vmem:[%s977 + $0x28] sm:$0x3] %v988
                %v990 = vld [vmem:[%s976 + $0xc] sm:$0x3]
                %991 = vst [vmem:[%s977 + $0x30] sm:$0x3] %v990
                %v992 = vld [vmem:[%s976 + $0xe] sm:$0x3]
                %993 = vst [vmem:[%s977 + $0x38] sm:$0x3] %v992
                %v994 = vld [vmem:[%s976 + $0x10] sm:$0x3]
                %995 = vst [vmem:[%s977 + $0x40] sm:$0x3] %v994
                %v996 = vld [vmem:[%s976 + $0x12] sm:$0x3]
                %997 = vst [vmem:[%s977 + $0x48] sm:$0x3] %v996
                %v998 = vld [vmem:[%s976 + $0x14] sm:$0x3]
                %999 = vst [vmem:[%s977 + $0x50] sm:$0x3] %v998
                %v1000 = vld [vmem:[%s976 + $0x16] sm:$0x3]
                %1001 = vst [vmem:[%s977 + $0x58] sm:$0x3] %v1000
                %v1002 = vld [vmem:[%s976 + $0x18] sm:$0x3]
                %1003 = vst [vmem:[%s977 + $0x60] sm:$0x3] %v1002
                %v1004 = vld [vmem:[%s976 + $0x1a] sm:$0x3]
                %1005 = vst [vmem:[%s977 + $0x68] sm:$0x3] %v1004
                %v1006 = vld [vmem:[%s976 + $0x1c] sm:$0x3]
                %1007 = vst [vmem:[%s977 + $0x70] sm:$0x3] %v1006
                %v1008 = vld [vmem:[%s976 + $0x1e] sm:$0x3]
                %1009 = vst [vmem:[%s977 + $0x78] sm:$0x3] %v1008
                %v1010 = vld [vmem:[%s976 + $0x20] sm:$0x3]
                %1011 = vst [vmem:[%s977 + $0x80] sm:$0x3] %v1010
                %v1012 = vld [vmem:[%s976 + $0x22] sm:$0x3]
                %1013 = vst [vmem:[%s977 + $0x88] sm:$0x3] %v1012
                %v1014 = vld [vmem:[%s976 + $0x24] sm:$0x3]
                %1015 = vst [vmem:[%s977 + $0x90] sm:$0x3] %v1014
                %v1016 = vld [vmem:[%s976 + $0x26] sm:$0x3]
                %1017 = vst [vmem:[%s977 + $0x98] sm:$0x3] %v1016
                %v1018 = vld [vmem:[%s976 + $0x28] sm:$0x3]
                %1019 = vst [vmem:[%s977 + $0xa0] sm:$0x3] %v1018
              $region335: #{geo_transformation_infer.1} parent=329 // loop_footer
                %s975 = sadd.s32 1, %s971
              $region336: #{geo_transformation_infer.1} parent=329 // loop_footer_branch
                %970 = sbr.rel target = $region332
              $region337: #{geo_transformation_infer.1} parent=329 // loop_exit
                _
            $region330: #{geo_transformation_infer.1} parent=321 // pred_fallthru
              _
          $region322: #{geo_transformation_infer.1} parent=317 // pred_fallthru
            _
          %1081 = vnop
        $region318: #{geo_transformation_infer.1} parent=285 // pred_fallthru
          _
      $region286: #{geo_transformation_infer.1} parent=5 // pred_fallthru
        _
      %p1082 = scmp.le.s32.totalorder 2, %s13
      // Predicated region
      $region356: #{geo_transformation_infer.1} parent=5 // pred_check
        %p1083 = pneg %p1082
      $region357: #{geo_transformation_infer.1} parent=5 // pred_check_branch
        %1085 = sbr.rel (%p1083) target = $region359
      $region358: #{geo_transformation_infer.1} parent=5 // pred_region
        %s1086 = ssub.s32 %s13, 2
        // Predicated region
        $region360: #{geo_transformation_infer.1} parent=358 // pred_check
          %p1087 = pneg %p252
        $region361: #{geo_transformation_infer.1} parent=358 // pred_check_branch
          %1089 = sbr.rel (%p1087) target = $region363
        $region362: #{geo_transformation_infer.1} parent=358 // pred_region
          %s1090 = sand.u32 %s237, 1
          %s1091 = sand.u32 %s237, 1
          %s1092 = smul.addr %s1091, 42
          %s1093 = scalar_lea.vmem [#allocation9], %s1092
        $region363: #{geo_transformation_infer.1} parent=358 // pred_fallthru
          _
      $region359: #{geo_transformation_infer.1} parent=5 // pred_fallthru
        _
    $region6: #{geo_transformation_infer.1} parent=1 // loop_footer
      %s17 = sadd.s32 1, %s13
    $region7: #{geo_transformation_infer.1} parent=1 // loop_footer_branch
      %12 = sbr.rel target = $region3
    $region8: #{geo_transformation_infer.1} parent=1 // loop_exit
      _

</llo_original>
